<compile_context>
chip_gen: v7x
topology: tpu7x:2x2x1
jax: 0.10.0
libtpu: 0.0.40
codegen_flags: <defaults>
</compile_context>

<pallas_src>
import functools
import math
from typing import NamedTuple, Optional

import jax
import jax.numpy as jnp
from jax.experimental import pallas as pl
from jax.experimental.pallas import tpu as pltpu


def _round_up(n: int, m: int) -> int:
    return (n + m - 1) // m * m


class LSTMParams(NamedTuple):
    w_x: jax.Array    # [I_pad, 4H] compute dtype (zero rows beyond I)
    w_h: jax.Array    # [H, 4H]     compute dtype
    b: jax.Array      # [1, 4H]     f32, bx + bh fused
    input_size: int   # original (unpadded) I


def prepare_lstm_params(wx, wh, bx, bh, *, compute_dtype=jnp.bfloat16, k_align=128):
    """One-time parameter prep (hoisted out of the per-call path).

    wx: [4H, I], wh: [4H, H], bx/bh: [4H]  (PyTorch nn.Linear convention).
    Transposes weights for `x @ w`, casts them to the MXU compute dtype,
    zero-pads the input-feature dim to a multiple of `k_align` (lane-dense K),
    and fuses the two biases.  Gate column order is torch.chunk(4,1): i,f,g,o.
    """
    H4, I = wx.shape
    H = wh.shape[1]
    assert H4 == 4 * H and wh.shape == (4 * H, H)
    assert H % 128 == 0, "pad hidden_size to a multiple of 128 for lane-aligned gates"
    I_pad = _round_up(max(I, k_align), k_align)
    w_x = wx.T.astype(compute_dtype)                      # [I, 4H]
    if I_pad != I:
        w_x = jnp.pad(w_x, ((0, I_pad - I), (0, 0)))      # zero rows -> no effect
    w_h = wh.T.astype(compute_dtype)                      # [H, 4H]
    b = (bx.astype(jnp.float32) + bh.astype(jnp.float32)).reshape(1, 4 * H)
    return LSTMParams(w_x=w_x, w_h=w_h, b=b, input_size=I)


# --------------------------------------------------------------------------- #
# Kernels
# --------------------------------------------------------------------------- #
def _gates_to_state(gates, c_prev, H, act_dtype):
    """f32 gate pre-activations -> (hy, cy) in f32.  H % 128 == 0 keeps every
    gate slice a lane-aligned vreg view (no XLU shuffles)."""
    g = gates.astype(act_dtype)                     # bf16 on v6e/v7x: 2x EUP rate
    ingate     = jax.nn.sigmoid(g[:, 0 * H:1 * H]).astype(jnp.float32)
    forgetgate = jax.nn.sigmoid(g[:, 1 * H:2 * H]).astype(jnp.float32)
    cellgate   = jnp.tanh(g[:, 2 * H:3 * H]).astype(jnp.float32)
    outgate    = jax.nn.sigmoid(g[:, 3 * H:4 * H]).astype(jnp.float32)
    cy = c_prev * forgetgate + ingate * cellgate    # f32 state math (VPU)
    hy = outgate * jnp.tanh(cy)
    return hy, cy


def lstm_cell_kernel(x_ref, h_ref, c_ref, wx_ref, wh_ref, b_ref, hy_ref, cy_ref,
                     *, act_dtype):
    # Two accumulating MXU matmuls (no wrapper-side concat); f32 accumulation.
    gates = jnp.dot(x_ref[...], wx_ref[...], preferred_element_type=jnp.float32)
    gates = gates + jnp.dot(h_ref[...], wh_ref[...], preferred_element_type=jnp.float32)
    gates = gates + b_ref[...]                      # [1,4H] bias broadcast (VPU)
    hy, cy = _gates_to_state(gates, c_ref[...].astype(jnp.float32),
                             hy_ref.shape[-1], act_dtype)
    hy_ref[...] = hy.astype(hy_ref.dtype)
    cy_ref[...] = cy.astype(cy_ref.dtype)


def lstm_seq_kernel(x_ref, h0_ref, c0_ref, wx_ref, wh_ref, b_ref,
                    hseq_ref, hy_ref, cy_ref, h_scr, c_scr, *, act_dtype):
    t = pl.program_id(1)

    @pl.when(t == 0)
    def _():                                        # new batch tile: load carries
        h_scr[...] = h0_ref[...]
        c_scr[...] = c0_ref[...].astype(jnp.float32)

    gates = jnp.dot(x_ref[...], wx_ref[...], preferred_element_type=jnp.float32)
    gates = gates + jnp.dot(h_scr[...], wh_ref[...], preferred_element_type=jnp.float32)
    gates = gates + b_ref[...]
    hy, cy = _gates_to_state(gates, c_scr[...], cy_ref.shape[-1], act_dtype)

    h_scr[...] = hy.astype(h_scr.dtype)             # carried recurrent state (compute dtype)
    c_scr[...] = cy                                 # carried cell state (f32)
    hseq_ref[...] = hy.astype(hseq_ref.dtype)       # per-step history (bf16 writeback)
    hy_ref[...] = hy.astype(hy_ref.dtype)           # final hy (last write survives)
    cy_ref[...] = cy.astype(cy_ref.dtype)           # final cy


# --------------------------------------------------------------------------- #
# Wrapper helpers
# --------------------------------------------------------------------------- #
def _choose_block_b(B: int, block_b: int) -> int:
    bb = _round_up(min(block_b, max(B, 1)), 8)
    if B > 8:
        # >= 2 batch tiles so ("parallel", ...) can shard across v7x's 2 TCs.
        bb = min(bb, _round_up((B + 1) // 2, 8))
    return bb


def _auto_vmem_limit_bytes(block_b, I_pad, H, compute_bytes):
    # Conservative budget: worst-case double-buffered weights (if the
    # single-buffer request is not honoured) + streamed/output tiles + scratch.
    weights = 2 * (I_pad + H) * 4 * H * compute_bytes + 2 * 4 * H * 4
    streamed = 2 * block_b * ((I_pad + H) * compute_bytes + H * 4)
    outputs = 2 * 3 * block_b * H * 4
    scratch = block_b * H * (compute_bytes + 4) + 2 * block_b * 4 * H * 4
    est = weights + streamed + outputs + scratch
    # Cap at 64 MiB (v7x physical); override via vmem_limit_bytes for big-H v6e.
    return int(min(max(2 * est, 16 << 20), 64 << 20))


def _stationary_spec(shape, index_map, mode):
    if mode is None:
        return pl.BlockSpec(shape, index_map)
    return pl.BlockSpec(shape, index_map, pipeline_mode=mode)


def _with_weight_buffering(run):
    """Prefer single-buffered stationary weights (constant index_map -> halves
    weight VMEM; needed for large H on v7x's 64 MiB). Fall back to default
    double buffering if this jax build rejects pipeline_mode / Buffered(1)."""
    try:
        return run(pl.Buffered(1))
    except Exception:
        return run(None)


# --------------------------------------------------------------------------- #
# Public entry points
# --------------------------------------------------------------------------- #
def lstm_cell(x, hx, cx, params: LSTMParams, *, block_b: int = 128,
              act_dtype=jnp.float32, vmem_limit_bytes: Optional[int] = None):
    """Single LSTMCell step (matches the PyTorch module's forward).

    x: [B, I], hx/cx: [B, H]. Returns (hy, cy), each [B, H] f32.
    block_b: batch tile, sweep per generation (128 default; 256 on v6e).
    act_dtype: jnp.bfloat16 on v6e/v7x doubles EUP sigmoid/tanh throughput.
    """
    w_x, w_h, b = params.w_x, params.w_h, params.b
    B, I = x.shape
    H = hx.shape[-1]
    I_pad = w_x.shape[0]
    assert I == params.input_size and w_h.shape == (H, 4 * H)

    cdt = w_x.dtype
    x = x.astype(cdt)
    if I_pad != I:
        x = jnp.pad(x, ((0, 0), (0, I_pad - I)))
    hxc = hx.astype(cdt)
    cxf = cx.astype(jnp.float32)

    block_b = _choose_block_b(B, block_b)
    B_pad = _round_up(B, block_b)
    if B_pad != B:
        pad = ((0, B_pad - B), (0, 0))
        x, hxc, cxf = jnp.pad(x, pad), jnp.pad(hxc, pad), jnp.pad(cxf, pad)

    if vmem_limit_bytes is None:
        vmem_limit_bytes = _auto_vmem_limit_bytes(block_b, I_pad, H,
                                                  jnp.dtype(cdt).itemsize)

    grid = (B_pad // block_b,)
    kernel = functools.partial(lstm_cell_kernel, act_dtype=act_dtype)

    def run(stationary_mode):
        return pl.pallas_call(
            kernel,
            out_shape=(jax.ShapeDtypeStruct((B_pad, H), jnp.float32),
                       jax.ShapeDtypeStruct((B_pad, H), jnp.float32)),
            grid=grid,
            in_specs=[
                pl.BlockSpec((block_b, I_pad), lambda i: (i, 0)),          # x tile
                pl.BlockSpec((block_b, H),     lambda i: (i, 0)),          # hx tile
                pl.BlockSpec((block_b, H),     lambda i: (i, 0)),          # cx tile
                _stationary_spec((I_pad, 4 * H), lambda i: (0, 0), stationary_mode),
                _stationary_spec((H, 4 * H),     lambda i: (0, 0), stationary_mode),
                _stationary_spec((1, 4 * H),     lambda i: (0, 0), stationary_mode),
            ],
            out_specs=(
                pl.BlockSpec((block_b, H), lambda i: (i, 0)),
                pl.BlockSpec((block_b, H), lambda i: (i, 0)),
            ),
            compiler_params=pltpu.CompilerParams(
                dimension_semantics=("parallel",),
                vmem_limit_bytes=vmem_limit_bytes,
            ),
        )(x, hxc, cxf, w_x, w_h, b)

    hy, cy = _with_weight_buffering(run)
    if B_pad != B:
        hy, cy = hy[:B], cy[:B]
    return hy, cy


def lstm_sequence(x_seq, hx, cx, params: LSTMParams, *, block_b: int = 128,
                  act_dtype=jnp.float32, history_dtype=None,
                  vmem_limit_bytes: Optional[int] = None):
    """Fused T-step LSTM recurrence in a single pallas_call.

    Weights stay resident in VMEM across the whole sequence (T grid axis is
    "arbitrary"); hx/cx are carried across steps in VMEM scratch; per-step x is
    streamed via BlockSpec; hidden-state history is written back in the
    recurrent compute dtype.

    x_seq: [T, B, I], hx/cx: [B, H].
    Returns (h_history [T, B, H] history_dtype, hy [B, H] f32, cy [B, H] f32).
    """
    w_x, w_h, b = params.w_x, params.w_h, params.b
    T, B, I = x_seq.shape
    H = hx.shape[-1]
    I_pad = w_x.shape[0]
    assert I == params.input_size
    cdt = w_x.dtype
    if history_dtype is None:
        history_dtype = cdt                         # bf16 writeback of hy history

    xs = x_seq.astype(cdt)
    if I_pad != I:
        xs = jnp.pad(xs, ((0, 0), (0, 0), (0, I_pad - I)))
    h0 = hx.astype(cdt)
    c0 = cx.astype(jnp.float32)

    block_b = _choose_block_b(B, block_b)
    B_pad = _round_up(B, block_b)
    if B_pad != B:
        xs = jnp.pad(xs, ((0, 0), (0, B_pad - B), (0, 0)))
        h0 = jnp.pad(h0, ((0, B_pad - B), (0, 0)))
        c0 = jnp.pad(c0, ((0, B_pad - B), (0, 0)))

    if vmem_limit_bytes is None:
        vmem_limit_bytes = _auto_vmem_limit_bytes(block_b, I_pad, H,
                                                  jnp.dtype(cdt).itemsize)

    grid = (B_pad // block_b, T)                    # batch outer (parallel), T inner
    kernel = functools.partial(lstm_seq_kernel, act_dtype=act_dtype)

    def run(stationary_mode):
        return pl.pallas_call(
            kernel,
            out_shape=(jax.ShapeDtypeStruct((T, B_pad, H), history_dtype),
                       jax.ShapeDtypeStruct((B_pad, H), jnp.float32),
                       jax.ShapeDtypeStruct((B_pad, H), jnp.float32)),
            grid=grid,
            in_specs=[
                pl.BlockSpec((None, block_b, I_pad), lambda i, t: (t, i, 0)),   # x_t
                pl.BlockSpec((block_b, H), lambda i, t: (i, 0)),                # h0
                pl.BlockSpec((block_b, H), lambda i, t: (i, 0)),                # c0
                _stationary_spec((I_pad, 4 * H), lambda i, t: (0, 0), stationary_mode),
                _stationary_spec((H, 4 * H),     lambda i, t: (0, 0), stationary_mode),
                _stationary_spec((1, 4 * H),     lambda i, t: (0, 0), stationary_mode),
            ],
            out_specs=(
                pl.BlockSpec((None, block_b, H), lambda i, t: (t, i, 0)),       # history
                pl.BlockSpec((block_b, H), lambda i, t: (i, 0)),                # final hy
                pl.BlockSpec((block_b, H), lambda i, t: (i, 0)),                # final cy
            ),
            scratch_shapes=[
                pltpu.VMEM((block_b, H), cdt),          # carried h (matmul operand dtype)
                pltpu.VMEM((block_b, H), jnp.float32),  # carried c (f32)
            ],
            compiler_params=pltpu.CompilerParams(
                dimension_semantics=("parallel", "arbitrary"),
                vmem_limit_bytes=vmem_limit_bytes,
            ),
        )(xs, h0, c0, w_x, w_h, b)

    h_hist, hy, cy = _with_weight_buffering(run)
    if B_pad != B:
        h_hist, hy, cy = h_hist[:, :B], hy[:B], cy[:B]
    return h_hist, hy, cy


# --------------------------------------------------------------------------- #
# References
# --------------------------------------------------------------------------- #
def lstm_cell_ref_f32(x, hx, cx, wx, wh, bx, bh):
    """Pure-JAX f32 reference matching the PyTorch forward exactly."""
    gates = x @ wx.T + bx + hx @ wh.T + bh
    H = hx.shape[-1]
    i = jax.nn.sigmoid(gates[:, 0 * H:1 * H])
    f = jax.nn.sigmoid(gates[:, 1 * H:2 * H])
    g = jnp.tanh(gates[:, 2 * H:3 * H])
    o = jax.nn.sigmoid(gates[:, 3 * H:4 * H])
    cy = cx * f + i * g
    hy = o * jnp.tanh(cy)
    return hy, cy


def _matched_step(x, h, c, params: LSTMParams):
    """One step with the SAME bf16-cast operands as the kernels (f32 accumulate)."""
    I = x.shape[-1]
    H = h.shape[-1]
    cdt = params.w_x.dtype
    xm = x.astype(cdt).astype(jnp.float32)
    hm = h.astype(cdt).astype(jnp.float32)
    wx_f = params.w_x[:I].astype(jnp.float32)
    wh_f = params.w_h.astype(jnp.float32)
    hi = jax.lax.Precision.HIGHEST
    gates = (jnp.dot(xm, wx_f, precision=hi) + jnp.dot(hm, wh_f, precision=hi)
             + params.b)
    i = jax.nn.sigmoid(gates[:, 0 * H:1 * H])
    f = jax.nn.sigmoid(gates[:, 1 * H:2 * H])
    g = jnp.tanh(gates[:, 2 * H:3 * H])
    o = jax.nn.sigmoid(gates[:, 3 * H:4 * H])
    cy = c.astype(jnp.float32) * f + i * g
    hy = o * jnp.tanh(cy)
    return hy, cy


def lstm_seq_ref_matched(x_seq, hx, cx, params: LSTMParams):
    h, c = hx, cx
    hs = []
    for t in range(x_seq.shape[0]):
        h, c = _matched_step(x_seq[t], h, c, params)
        hs.append(h)
    return jnp.stack(hs), h, c


# --------------------------------------------------------------------------- #
if __name__ == "__main__":
    B, I, H, T = 8, 64, 128, 8

    key = jax.random.PRNGKey(0)
    k_wx, k_wh, k_bx, k_bh, k_x, k_h, k_c, k_xs = jax.random.split(key, 8)

    # Deterministic init matching reset_parameters(): uniform(-std, std), std=1/sqrt(H).
    std = 1.0 / math.sqrt(H)
    wx = jax.random.uniform(k_wx, (4 * H, I), jnp.float32, -std, std)
    wh = jax.random.uniform(k_wh, (4 * H, H), jnp.float32, -std, std)
    bx = jax.random.uniform(k_bx, (4 * H,), jnp.float32, -std, std)
    bh = jax.random.uniform(k_bh, (4 * H,), jnp.float32, -std, std)

    x = jax.random.normal(k_x, (B, I), jnp.float32)
    hx = jax.random.normal(k_h, (B, H), jnp.float32)
    cx = jax.random.normal(k_c, (B, H), jnp.float32)
    x_seq = jax.random.normal(k_xs, (T, B, I), jnp.float32)

    # One-time hoisted param prep: transpose, pad K to 128, fuse biases, bf16 cast.
    params = prepare_lstm_params(wx, wh, bx, bh, compute_dtype=jnp.bfloat16)

    # --- Single step (== PyTorch LSTMCell.forward) -------------------------
    hy, cy = lstm_cell(x, hx, cx, params)
    jax.block_until_ready((hy, cy))

    hy_m, cy_m = _matched_step(x, hx, cx, params)
    assert jnp.allclose(hy, hy_m, atol=1e-4, rtol=1e-4), "cell: kernel vs matched ref (hy)"
    assert jnp.allclose(cy, cy_m, atol=1e-4, rtol=1e-4), "cell: kernel vs matched ref (cy)"

    hy_f, cy_f = lstm_cell_ref_f32(x, hx, cx, wx, wh, bx, bh)
    assert jnp.allclose(hy, hy_f, atol=5e-2, rtol=5e-2), "cell: kernel vs f32 ref (hy)"
    assert jnp.allclose(cy, cy_f, atol=5e-2, rtol=5e-2), "cell: kernel vs f32 ref (cy)"

    # --- Fused T-step recurrence (weights resident across the whole sequence) ---
    h_hist, hyT, cyT = lstm_sequence(x_seq, hx, cx, params)
    jax.block_until_ready((h_hist, hyT, cyT))

    hs_m, hyT_m, cyT_m = lstm_seq_ref_matched(x_seq, hx, cx, params)
    assert jnp.allclose(hyT, hyT_m, atol=1e-2, rtol=1e-2), "seq: kernel vs matched ref (hy)"
    assert jnp.allclose(cyT, cyT_m, atol=1e-2, rtol=1e-2), "seq: kernel vs matched ref (cy)"
    assert jnp.allclose(h_hist.astype(jnp.float32), hs_m, atol=3e-2, rtol=3e-2), \
        "seq: kernel vs matched ref (bf16 history)"

    # Loose check vs. a full-f32 PyTorch-style loop (bf16 quantization over T steps).
    h_f, c_f = hx, cx
    for t in range(T):
        h_f, c_f = lstm_cell_ref_f32(x_seq[t], h_f, c_f, wx, wh, bx, bh)
    assert jnp.allclose(hyT, h_f, atol=1e-1, rtol=1e-1), "seq: kernel vs f32 loop (hy)"
    assert jnp.allclose(cyT, c_f, atol=1e-1, rtol=1e-1), "seq: kernel vs f32 loop (cy)"

    print("KERNEL_OK")
</pallas_src>

<mosaic_0001>
module attributes {stable_mosaic.version = 11 : i64} {
  func.func @lstm_cell_kernel(%arg0: i32, %arg1: memref<8x128xbf16, #tpu.memory_space<vmem>>, %arg2: memref<8x128xbf16, #tpu.memory_space<vmem>>, %arg3: memref<8x128xf32, #tpu.memory_space<vmem>>, %arg4: memref<128x512xbf16, #tpu.memory_space<vmem>>, %arg5: memref<128x512xbf16, #tpu.memory_space<vmem>>, %arg6: memref<1x512xf32, #tpu.memory_space<vmem>>, %arg7: memref<8x128xf32, #tpu.memory_space<vmem>>, %arg8: memref<8x128xf32, #tpu.memory_space<vmem>>) attributes {dimension_semantics = [#tpu.dimension_semantics<parallel>], iteration_bounds = array<i64: 1>, scalar_prefetch = 0 : i64, scratch_operands = 0 : i64, tpu.core_type = #tpu.core_type<tc>, window_params = [{transform_indices = @transform_0, window_bounds = array<i64: 8, 128>}, {transform_indices = @transform_1, window_bounds = array<i64: 8, 128>}, {transform_indices = @transform_2, window_bounds = array<i64: 8, 128>}, {pipeline_mode = #tpu.pipeline_mode<synchronous>, transform_indices = @transform_3, window_bounds = array<i64: 128, 512>}, {pipeline_mode = #tpu.pipeline_mode<synchronous>, transform_indices = @transform_4, window_bounds = array<i64: 128, 512>}, {pipeline_mode = #tpu.pipeline_mode<synchronous>, transform_indices = @transform_5, window_bounds = array<i64: 1, 512>}, {transform_indices = @transform_6, window_bounds = array<i64: 8, 128>}, {transform_indices = @transform_7, window_bounds = array<i64: 8, 128>}]} {
    %c0 = arith.constant 0 : index
    %c0_0 = arith.constant 0 : index
    %0 = vector.load %arg1[%c0, %c0_0] : memref<8x128xbf16, #tpu.memory_space<vmem>>, vector<8x128xbf16>
    %c0_1 = arith.constant 0 : index
    %c0_2 = arith.constant 0 : index
    %1 = vector.load %arg4[%c0_1, %c0_2] : memref<128x512xbf16, #tpu.memory_space<vmem>>, vector<128x512xbf16>
    %cst = arith.constant dense<0.000000e+00> : vector<8x512xf32>
    %2 = tpu.matmul %0, %1, %cst {dimension_numbers = #tpu.dot_dimension_numbers<[1], [0], [0], [1], [0, 0, 1, 1], [], []>} : vector<8x128xbf16>, vector<128x512xbf16>, vector<8x512xf32> -> vector<8x512xf32>
    %c0_3 = arith.constant 0 : index
    %c0_4 = arith.constant 0 : index
    %3 = vector.load %arg2[%c0_3, %c0_4] : memref<8x128xbf16, #tpu.memory_space<vmem>>, vector<8x128xbf16>
    %c0_5 = arith.constant 0 : index
    %c0_6 = arith.constant 0 : index
    %4 = vector.load %arg5[%c0_5, %c0_6] : memref<128x512xbf16, #tpu.memory_space<vmem>>, vector<128x512xbf16>
    %cst_7 = arith.constant dense<0.000000e+00> : vector<8x512xf32>
    %5 = tpu.matmul %3, %4, %cst_7 {dimension_numbers = #tpu.dot_dimension_numbers<[1], [0], [0], [1], [0, 0, 1, 1], [], []>} : vector<8x128xbf16>, vector<128x512xbf16>, vector<8x512xf32> -> vector<8x512xf32>
    %6 = arith.addf %2, %5 : vector<8x512xf32>
    %c0_8 = arith.constant 0 : index
    %c0_9 = arith.constant 0 : index
    %7 = vector.load %arg6[%c0_8, %c0_9] : memref<1x512xf32, #tpu.memory_space<vmem>>, vector<1x512xf32>
    %8 = vector.broadcast %7 : vector<1x512xf32> to vector<8x512xf32>
    %9 = arith.addf %6, %8 : vector<8x512xf32>
    %c0_10 = arith.constant 0 : index
    %c0_11 = arith.constant 0 : index
    %10 = vector.load %arg3[%c0_10, %c0_11] : memref<8x128xf32, #tpu.memory_space<vmem>>, vector<8x128xf32>
    %11 = vector.extract_strided_slice %9 {offsets = [0, 0], sizes = [8, 128], strides = [1, 1]} : vector<8x512xf32> to vector<8x128xf32>
    %12 = arith.negf %11 : vector<8x128xf32>
    %13 = math.exp %12 : vector<8x128xf32>
    %cst_12 = arith.constant 1.000000e+00 : f32
    %14 = vector.broadcast %cst_12 : f32 to vector<8x128xf32>
    %15 = arith.addf %14, %13 : vector<8x128xf32>
    %16 = arith.divf %14, %15 : vector<8x128xf32>
    %17 = vector.extract_strided_slice %9 {offsets = [0, 128], sizes = [8, 128], strides = [1, 1]} : vector<8x512xf32> to vector<8x128xf32>
    %18 = arith.negf %17 : vector<8x128xf32>
    %19 = math.exp %18 : vector<8x128xf32>
    %cst_13 = arith.constant 1.000000e+00 : f32
    %20 = vector.broadcast %cst_13 : f32 to vector<8x128xf32>
    %21 = arith.addf %20, %19 : vector<8x128xf32>
    %22 = arith.divf %20, %21 : vector<8x128xf32>
    %23 = vector.extract_strided_slice %9 {offsets = [0, 256], sizes = [8, 128], strides = [1, 1]} : vector<8x512xf32> to vector<8x128xf32>
    %24 = math.tanh %23 : vector<8x128xf32>
    %25 = vector.extract_strided_slice %9 {offsets = [0, 384], sizes = [8, 128], strides = [1, 1]} : vector<8x512xf32> to vector<8x128xf32>
    %26 = arith.negf %25 : vector<8x128xf32>
    %27 = math.exp %26 : vector<8x128xf32>
    %cst_14 = arith.constant 1.000000e+00 : f32
    %28 = vector.broadcast %cst_14 : f32 to vector<8x128xf32>
    %29 = arith.addf %28, %27 : vector<8x128xf32>
    %30 = arith.divf %28, %29 : vector<8x128xf32>
    %31 = arith.mulf %10, %22 : vector<8x128xf32>
    %32 = arith.mulf %16, %24 : vector<8x128xf32>
    %33 = arith.addf %31, %32 : vector<8x128xf32>
    %34 = math.tanh %33 : vector<8x128xf32>
    %35 = arith.mulf %30, %34 : vector<8x128xf32>
    %c0_15 = arith.constant 0 : index
    %c0_16 = arith.constant 0 : index
    %36 = vector.load %arg7[%c0_15, %c0_16] : memref<8x128xf32, #tpu.memory_space<vmem>>, vector<8x128xf32>
    tpu.vector_store %arg7[%c0_15, %c0_16], %35 {strides = array<i32>} : memref<8x128xf32, #tpu.memory_space<vmem>>, vector<8x128xf32>,
    %c0_17 = arith.constant 0 : index
    %c0_18 = arith.constant 0 : index
    %37 = vector.load %arg8[%c0_17, %c0_18] : memref<8x128xf32, #tpu.memory_space<vmem>>, vector<8x128xf32>
    tpu.vector_store %arg8[%c0_17, %c0_18], %33 {strides = array<i32>} : memref<8x128xf32, #tpu.memory_space<vmem>>, vector<8x128xf32>,
    return
  }
  func.func @transform_0(%arg0: i32) -> (i32, i32) {
    %c0_i32 = arith.constant 0 : i32
    %c0_i32_0 = arith.constant 0 : i32
    return %arg0, %c0_i32 : i32, i32
  }
  func.func @transform_1(%arg0: i32) -> (i32, i32) {
    %c0_i32 = arith.constant 0 : i32
    %c0_i32_0 = arith.constant 0 : i32
    return %arg0, %c0_i32 : i32, i32
  }
  func.func @transform_2(%arg0: i32) -> (i32, i32) {
    %c0_i32 = arith.constant 0 : i32
    %c0_i32_0 = arith.constant 0 : i32
    return %arg0, %c0_i32 : i32, i32
  }
  func.func @transform_3(%arg0: i32) -> (i32, i32) {
    %c0_i32 = arith.constant 0 : i32
    %c0_i32_0 = arith.constant 0 : i32
    %c0_i32_1 = arith.constant 0 : i32
    return %c0_i32, %c0_i32_0 : i32, i32
  }
  func.func @transform_4(%arg0: i32) -> (i32, i32) {
    %c0_i32 = arith.constant 0 : i32
    %c0_i32_0 = arith.constant 0 : i32
    %c0_i32_1 = arith.constant 0 : i32
    return %c0_i32, %c0_i32_0 : i32, i32
  }
  func.func @transform_5(%arg0: i32) -> (i32, i32) {
    %c0_i32 = arith.constant 0 : i32
    %c0_i32_0 = arith.constant 0 : i32
    %c0_i32_1 = arith.constant 0 : i32
    return %c0_i32, %c0_i32_0 : i32, i32
  }
  func.func @transform_6(%arg0: i32) -> (i32, i32) {
    %c0_i32 = arith.constant 0 : i32
    %c0_i32_0 = arith.constant 0 : i32
    return %arg0, %c0_i32 : i32, i32
  }
  func.func @transform_7(%arg0: i32) -> (i32, i32) {
    %c0_i32 = arith.constant 0 : i32
    %c0_i32_0 = arith.constant 0 : i32
    return %arg0, %c0_i32 : i32, i32
  }
}

module attributes {stable_mosaic.version = 11 : i64} {
  func.func @lstm_cell_kernel(%arg0: i32, %arg1: memref<8x128xbf16, #tpu.memory_space<vmem>>, %arg2: memref<8x128xbf16, #tpu.memory_space<vmem>>, %arg3: memref<8x128xf32, #tpu.memory_space<vmem>>, %arg4: memref<128x512xbf16, #tpu.memory_space<vmem>>, %arg5: memref<128x512xbf16, #tpu.memory_space<vmem>>, %arg6: memref<1x512xf32, #tpu.memory_space<vmem>>, %arg7: memref<8x128xf32, #tpu.memory_space<vmem>>, %arg8: memref<8x128xf32, #tpu.memory_space<vmem>>) attributes {dimension_semantics = [#tpu.dimension_semantics<parallel>], iteration_bounds = array<i64: 1>, scalar_prefetch = 0 : i64, scratch_operands = 0 : i64, tpu.core_type = #tpu.core_type<tc>, window_params = [{transform_indices = @transform_0, window_bounds = array<i64: 8, 128>}, {transform_indices = @transform_1, window_bounds = array<i64: 8, 128>}, {transform_indices = @transform_2, window_bounds = array<i64: 8, 128>}, {pipeline_mode = #tpu.pipeline_mode<synchronous>, transform_indices = @transform_3, window_bounds = array<i64: 128, 512>}, {pipeline_mode = #tpu.pipeline_mode<synchronous>, transform_indices = @transform_4, window_bounds = array<i64: 128, 512>}, {pipeline_mode = #tpu.pipeline_mode<synchronous>, transform_indices = @transform_5, window_bounds = array<i64: 1, 512>}, {transform_indices = @transform_6, window_bounds = array<i64: 8, 128>}, {transform_indices = @transform_7, window_bounds = array<i64: 8, 128>}]} {
    %c0 = arith.constant 0 : index
    %c0_0 = arith.constant 0 : index
    %0 = vector.load %arg1[%c0, %c0_0] : memref<8x128xbf16, #tpu.memory_space<vmem>>, vector<8x128xbf16>
    %c0_1 = arith.constant 0 : index
    %c0_2 = arith.constant 0 : index
    %1 = vector.load %arg4[%c0_1, %c0_2] : memref<128x512xbf16, #tpu.memory_space<vmem>>, vector<128x512xbf16>
    %cst = arith.constant dense<0.000000e+00> : vector<8x512xf32>
    %2 = tpu.matmul %0, %1, %cst {dimension_numbers = #tpu.dot_dimension_numbers<[1], [0], [0], [1], [0, 0, 1, 1], [], []>} : vector<8x128xbf16>, vector<128x512xbf16>, vector<8x512xf32> -> vector<8x512xf32>
    %c0_3 = arith.constant 0 : index
    %c0_4 = arith.constant 0 : index
    %3 = vector.load %arg2[%c0_3, %c0_4] : memref<8x128xbf16, #tpu.memory_space<vmem>>, vector<8x128xbf16>
    %c0_5 = arith.constant 0 : index
    %c0_6 = arith.constant 0 : index
    %4 = vector.load %arg5[%c0_5, %c0_6] : memref<128x512xbf16, #tpu.memory_space<vmem>>, vector<128x512xbf16>
    %cst_7 = arith.constant dense<0.000000e+00> : vector<8x512xf32>
    %5 = tpu.matmul %3, %4, %cst_7 {dimension_numbers = #tpu.dot_dimension_numbers<[1], [0], [0], [1], [0, 0, 1, 1], [], []>} : vector<8x128xbf16>, vector<128x512xbf16>, vector<8x512xf32> -> vector<8x512xf32>
    %6 = arith.addf %2, %5 : vector<8x512xf32>
    %c0_8 = arith.constant 0 : index
    %c0_9 = arith.constant 0 : index
    %7 = vector.load %arg6[%c0_8, %c0_9] : memref<1x512xf32, #tpu.memory_space<vmem>>, vector<1x512xf32>
    %8 = vector.broadcast %7 : vector<1x512xf32> to vector<8x512xf32>
    %9 = arith.addf %6, %8 : vector<8x512xf32>
    %c0_10 = arith.constant 0 : index
    %c0_11 = arith.constant 0 : index
    %10 = vector.load %arg3[%c0_10, %c0_11] : memref<8x128xf32, #tpu.memory_space<vmem>>, vector<8x128xf32>
    %11 = vector.extract_strided_slice %9 {offsets = [0, 0], sizes = [8, 128], strides = [1, 1]} : vector<8x512xf32> to vector<8x128xf32>
    %12 = arith.negf %11 : vector<8x128xf32>
    %13 = math.exp %12 : vector<8x128xf32>
    %cst_12 = arith.constant 1.000000e+00 : f32
    %14 = vector.broadcast %cst_12 : f32 to vector<8x128xf32>
    %15 = arith.addf %14, %13 : vector<8x128xf32>
    %16 = arith.divf %14, %15 : vector<8x128xf32>
    %17 = vector.extract_strided_slice %9 {offsets = [0, 128], sizes = [8, 128], strides = [1, 1]} : vector<8x512xf32> to vector<8x128xf32>
    %18 = arith.negf %17 : vector<8x128xf32>
    %19 = math.exp %18 : vector<8x128xf32>
    %cst_13 = arith.constant 1.000000e+00 : f32
    %20 = vector.broadcast %cst_13 : f32 to vector<8x128xf32>
    %21 = arith.addf %20, %19 : vector<8x128xf32>
    %22 = arith.divf %20, %21 : vector<8x128xf32>
    %23 = vector.extract_strided_slice %9 {offsets = [0, 256], sizes = [8, 128], strides = [1, 1]} : vector<8x512xf32> to vector<8x128xf32>
    %24 = math.tanh %23 : vector<8x128xf32>
    %25 = vector.extract_strided_slice %9 {offsets = [0, 384], sizes = [8, 128], strides = [1, 1]} : vector<8x512xf32> to vector<8x128xf32>
    %26 = arith.negf %25 : vector<8x128xf32>
    %27 = math.exp %26 : vector<8x128xf32>
    %cst_14 = arith.constant 1.000000e+00 : f32
    %28 = vector.broadcast %cst_14 : f32 to vector<8x128xf32>
    %29 = arith.addf %28, %27 : vector<8x128xf32>
    %30 = arith.divf %28, %29 : vector<8x128xf32>
    %31 = arith.mulf %10, %22 : vector<8x128xf32>
    %32 = arith.mulf %16, %24 : vector<8x128xf32>
    %33 = arith.addf %31, %32 : vector<8x128xf32>
    %34 = math.tanh %33 : vector<8x128xf32>
    %35 = arith.mulf %30, %34 : vector<8x128xf32>
    %c0_15 = arith.constant 0 : index
    %c0_16 = arith.constant 0 : index
    %36 = vector.load %arg7[%c0_15, %c0_16] : memref<8x128xf32, #tpu.memory_space<vmem>>, vector<8x128xf32>
    tpu.vector_store %arg7[%c0_15, %c0_16], %35 {strides = array<i32>} : memref<8x128xf32, #tpu.memory_space<vmem>>, vector<8x128xf32>,
    %c0_17 = arith.constant 0 : index
    %c0_18 = arith.constant 0 : index
    %37 = vector.load %arg8[%c0_17, %c0_18] : memref<8x128xf32, #tpu.memory_space<vmem>>, vector<8x128xf32>
    tpu.vector_store %arg8[%c0_17, %c0_18], %33 {strides = array<i32>} : memref<8x128xf32, #tpu.memory_space<vmem>>, vector<8x128xf32>,
    return
  }
  func.func @transform_0(%arg0: i32) -> (i32, i32) {
    %c0_i32 = arith.constant 0 : i32
    %c0_i32_0 = arith.constant 0 : i32
    return %arg0, %c0_i32 : i32, i32
  }
  func.func @transform_1(%arg0: i32) -> (i32, i32) {
    %c0_i32 = arith.constant 0 : i32
    %c0_i32_0 = arith.constant 0 : i32
    return %arg0, %c0_i32 : i32, i32
  }
  func.func @transform_2(%arg0: i32) -> (i32, i32) {
    %c0_i32 = arith.constant 0 : i32
    %c0_i32_0 = arith.constant 0 : i32
    return %arg0, %c0_i32 : i32, i32
  }
  func.func @transform_3(%arg0: i32) -> (i32, i32) {
    %c0_i32 = arith.constant 0 : i32
    %c0_i32_0 = arith.constant 0 : i32
    %c0_i32_1 = arith.constant 0 : i32
    return %c0_i32, %c0_i32_0 : i32, i32
  }
  func.func @transform_4(%arg0: i32) -> (i32, i32) {
    %c0_i32 = arith.constant 0 : i32
    %c0_i32_0 = arith.constant 0 : i32
    %c0_i32_1 = arith.constant 0 : i32
    return %c0_i32, %c0_i32_0 : i32, i32
  }
  func.func @transform_5(%arg0: i32) -> (i32, i32) {
    %c0_i32 = arith.constant 0 : i32
    %c0_i32_0 = arith.constant 0 : i32
    %c0_i32_1 = arith.constant 0 : i32
    return %c0_i32, %c0_i32_0 : i32, i32
  }
  func.func @transform_6(%arg0: i32) -> (i32, i32) {
    %c0_i32 = arith.constant 0 : i32
    %c0_i32_0 = arith.constant 0 : i32
    return %arg0, %c0_i32 : i32, i32
  }
  func.func @transform_7(%arg0: i32) -> (i32, i32) {
    %c0_i32 = arith.constant 0 : i32
    %c0_i32_0 = arith.constant 0 : i32
    return %arg0, %c0_i32 : i32, i32
  }
}

</mosaic_0001>

<llo_original>
// kernel: tpu_custom_call.1
$region0: #{tpu_custom_call.1}
  #allocation0 [shape = 'u32[]', space=smem, size = 0x4, offset = 0x4, fixed_abs, tag = 'smem constant byte address 0x4 - core index']
  #allocation1 [shape = 'u32[144,128]{1,0:T(1,128)}', space=vmem, size = 0x12000, scoped, tag = 'internal scratch']
  %s0 = inlined_call_operand.hbm [shape: bf16[8,128], index: 0, kind: input, shape index: {}]
  %s1 = inlined_call_operand.hbm [shape: bf16[8,128], index: 1, kind: input, shape index: {}]
  %s2 = inlined_call_operand.hbm [shape: f32[8,128], index: 2, kind: input, shape index: {}]
  %s3 = inlined_call_operand.hbm [shape: bf16[128,512], index: 3, kind: input, shape index: {}]
  %s4 = inlined_call_operand.hbm [shape: bf16[128,512], index: 4, kind: input, shape index: {}]
  %s5 = inlined_call_operand.vmem [shape: f32[1,512], index: 5, kind: input, shape index: {}]
  %s6 = inlined_call_operand.hbm [shape: f32[8,128], index: 6, kind: output, shape index: {0}]
  %s7 = inlined_call_operand.hbm [shape: f32[8,128], index: 7, kind: output, shape index: {1}]
  %8 = xla_tuple %s6, %s7
  %s9 = sld [smem:[#allocation0]]
  $region62: #{tpu_custom_call.1} parent=0
    _
  %s11 = ssub.s32 1, %s9
  %s12 = scalar_select 0, %s11, %s9
  $region1: #{tpu_custom_call.1} parent=0
    #allocation2 [shape = 'u8[2048]{0}', space=vmem, size = 0x800, scoped, tag = 'input window, operand 0, single buffered']
    #allocation3 [shape = 's32[1]{0}', space=sflag, size = 0x4, scoped, tag = 'scoped memory for tpu_custom_call.1']
    #allocation4 [shape = 's32[1]{0}', space=sflag, size = 0x4, scoped, tag = 'scoped memory for tpu_custom_call.1']
    #allocation5 [shape = 'u8[2048]{0}', space=vmem, size = 0x800, scoped, tag = 'input window, operand 1, single buffered']
    #allocation6 [shape = 's32[1]{0}', space=sflag, size = 0x4, scoped, tag = 'scoped memory for tpu_custom_call.1']
    #allocation7 [shape = 'u8[4096]{0}', space=vmem, size = 0x1000, scoped, tag = 'input window, operand 2, single buffered']
    #allocation8 [shape = 'u8[131072]{0}', space=vmem, size = 0x20000, scoped, tag = 'input window, operand 3, single buffered']
    #allocation9 [shape = 's32[1]{0}', space=sflag, size = 0x4, scoped, tag = 'scoped memory for tpu_custom_call.1']
    #allocation10 [shape = 'u8[131072]{0}', space=vmem, size = 0x20000, scoped, tag = 'input window, operand 4, single buffered']
    #allocation11 [shape = 'u8[4096]{0}', space=vmem, size = 0x1000, scoped, tag = 'output window, operand 0, single buffered']
    #allocation12 [shape = 'u8[4096]{0}', space=vmem, size = 0x1000, scoped, tag = 'output window, operand 1, single buffered']
    #allocation13 [shape = 's32[1]{0}', space=sflag, size = 0x4, scoped, tag = 'scoped memory for tpu_custom_call.1']
    %13 = vsyncpa [#allocation3], 0
    %14 = vsyncpa [#allocation6], 0
    %15 = vsyncpa [#allocation9], 0
    %16 = vsyncpa [#allocation4], 0
    %17 = vsyncpa [#allocation13], 0
    // Predicated region
    $region2: #{tpu_custom_call.1} parent=1 // pred_check
      _
    $region3: #{tpu_custom_call.1} parent=1 // pred_check_branch
      %19 = sbr.rel (0) target = $region5
    $region4: #{tpu_custom_call.1} parent=1 // pred_region
      %s21 = ssub.s32 64, 64
      %22 = vsyncadd [#allocation3], %s21
      %s24 = sshll.u32 [#allocation2], 4
      %s25 = int_to_ptr.vmem [resolvable:$true] %s24
      %27 = dma.hbm_to_vmem [thread:$0]  %s0, 64, %s25, [#allocation3]
    $region5: #{tpu_custom_call.1} parent=1 // pred_fallthru
      _
    // Predicated region
    $region6: #{tpu_custom_call.1} parent=1 // pred_check
      _
    $region7: #{tpu_custom_call.1} parent=1 // pred_check_branch
      %29 = sbr.rel (0) target = $region9
    $region8: #{tpu_custom_call.1} parent=1 // pred_region
      %s31 = ssub.s32 64, 64
      %32 = vsyncadd [#allocation6], %s31
      %s34 = sshll.u32 [#allocation5], 4
      %s35 = int_to_ptr.vmem [resolvable:$true] %s34
      %37 = dma.hbm_to_vmem [thread:$0]  %s1, 64, %s35, [#allocation6]
    $region9: #{tpu_custom_call.1} parent=1 // pred_fallthru
      _
    // Predicated region
    $region10: #{tpu_custom_call.1} parent=1 // pred_check
      _
    $region11: #{tpu_custom_call.1} parent=1 // pred_check_branch
      %39 = sbr.rel (0) target = $region13
    $region12: #{tpu_custom_call.1} parent=1 // pred_region
      %s41 = ssub.s32 128, 128
      %42 = vsyncadd [#allocation6], %s41
      %s44 = sshll.u32 [#allocation7], 4
      %s45 = int_to_ptr.vmem [resolvable:$true] %s44
      %47 = dma.hbm_to_vmem [thread:$0]  %s2, 128, %s45, [#allocation6]
    $region13: #{tpu_custom_call.1} parent=1 // pred_fallthru
      _
    // Predicated region
    $region14: #{tpu_custom_call.1} parent=1 // pred_check
      _
    $region15: #{tpu_custom_call.1} parent=1 // pred_check_branch
      %49 = sbr.rel (0) target = $region17
    $region16: #{tpu_custom_call.1} parent=1 // pred_region
      %s51 = ssub.s32 4096, 4096
      %52 = vsyncadd [#allocation9], %s51
      %s53 = sshll.u32 [#allocation8], 4
      %s54 = int_to_ptr.vmem [resolvable:$true] %s53
      %59 = dma.hbm_to_vmem [thread:$0]  %s3, 4096, %s54, [#allocation9], 256, 256, 16
    $region17: #{tpu_custom_call.1} parent=1 // pred_fallthru
      _
    // Predicated region
    $region18: #{tpu_custom_call.1} parent=1 // pred_check
      _
    $region19: #{tpu_custom_call.1} parent=1 // pred_check_branch
      %61 = sbr.rel (0) target = $region21
    $region20: #{tpu_custom_call.1} parent=1 // pred_region
      %s63 = ssub.s32 4096, 4096
      %64 = vsyncadd [#allocation9], %s63
      %s65 = sshll.u32 [#allocation10], 4
      %s66 = int_to_ptr.vmem [resolvable:$true] %s65
      %71 = dma.hbm_to_vmem [thread:$0]  %s4, 4096, %s66, [#allocation9], 256, 256, 16
    $region21: #{tpu_custom_call.1} parent=1 // pred_fallthru
      _
    // Predicated region
    $region22: #{tpu_custom_call.1} parent=1 // pred_check
      _
    $region23: #{tpu_custom_call.1} parent=1 // pred_check_branch
      %73 = sbr.rel (0) target = $region25
    $region24: #{tpu_custom_call.1} parent=1 // pred_region
      _
    $region25: #{tpu_custom_call.1} parent=1 // pred_fallthru
      _
    // Predicated region
    $region26: #{tpu_custom_call.1} parent=1 // pred_check
      _
    $region27: #{tpu_custom_call.1} parent=1 // pred_check_branch
      %75 = sbr.rel (0) target = $region29
    $region28: #{tpu_custom_call.1} parent=1 // pred_region
      %76 = dma.done [#allocation3], 64
    $region29: #{tpu_custom_call.1} parent=1 // pred_fallthru
      _
    // Predicated region
    $region30: #{tpu_custom_call.1} parent=1 // pred_check
      _
    $region31: #{tpu_custom_call.1} parent=1 // pred_check_branch
      %78 = sbr.rel (0) target = $region33
    $region32: #{tpu_custom_call.1} parent=1 // pred_region
      %79 = dma.done [#allocation6], 64
    $region33: #{tpu_custom_call.1} parent=1 // pred_fallthru
      _
    // Predicated region
    $region34: #{tpu_custom_call.1} parent=1 // pred_check
      _
    $region35: #{tpu_custom_call.1} parent=1 // pred_check_branch
      %81 = sbr.rel (0) target = $region37
    $region36: #{tpu_custom_call.1} parent=1 // pred_region
      %82 = dma.done [#allocation6], 128
    $region37: #{tpu_custom_call.1} parent=1 // pred_fallthru
      _
    // Predicated region
    $region38: #{tpu_custom_call.1} parent=1 // pred_check
      _
    $region39: #{tpu_custom_call.1} parent=1 // pred_check_branch
      %84 = sbr.rel (0) target = $region41
    $region40: #{tpu_custom_call.1} parent=1 // pred_region
      %85 = dma.done [#allocation9], 4096
    $region41: #{tpu_custom_call.1} parent=1 // pred_fallthru
      _
    // Predicated region
    $region42: #{tpu_custom_call.1} parent=1 // pred_check
      _
    $region43: #{tpu_custom_call.1} parent=1 // pred_check_branch
      %87 = sbr.rel (0) target = $region45
    $region44: #{tpu_custom_call.1} parent=1 // pred_region
      %88 = dma.done [#allocation9], 4096
    $region45: #{tpu_custom_call.1} parent=1 // pred_fallthru
      _
    %v90 = vld [vmem:[#allocation2] sm:$0xf]
    %v91 = vld [vmem:[#allocation8] sm:$0xff]
    %v92 = vld [vmem:[#allocation8 + $0x8] sm:$0xff]
    %v93 = vld [vmem:[#allocation8 + $0x10] sm:$0xff]
    %v94 = vld [vmem:[#allocation8 + $0x18] sm:$0xff]
    %v95 = vld [vmem:[#allocation8 + $0x20] sm:$0xff]
    %v96 = vld [vmem:[#allocation8 + $0x28] sm:$0xff]
    %v97 = vld [vmem:[#allocation8 + $0x30] sm:$0xff]
    %v98 = vld [vmem:[#allocation8 + $0x38] sm:$0xff]
    %v99 = vld [vmem:[#allocation8 + $0x40] sm:$0xff]
    %v100 = vld [vmem:[#allocation8 + $0x48] sm:$0xff]
    %v101 = vld [vmem:[#allocation8 + $0x50] sm:$0xff]
    %v102 = vld [vmem:[#allocation8 + $0x58] sm:$0xff]
    %v103 = vld [vmem:[#allocation8 + $0x60] sm:$0xff]
    %v104 = vld [vmem:[#allocation8 + $0x68] sm:$0xff]
    %v105 = vld [vmem:[#allocation8 + $0x70] sm:$0xff]
    %v106 = vld [vmem:[#allocation8 + $0x78] sm:$0xff]
    %v107 = vld [vmem:[#allocation8 + $0x80] sm:$0xff]
    %v108 = vld [vmem:[#allocation8 + $0x88] sm:$0xff]
    %v109 = vld [vmem:[#allocation8 + $0x90] sm:$0xff]
    %v110 = vld [vmem:[#allocation8 + $0x98] sm:$0xff]
    %v111 = vld [vmem:[#allocation8 + $0xa0] sm:$0xff]
    %v112 = vld [vmem:[#allocation8 + $0xa8] sm:$0xff]
    %v113 = vld [vmem:[#allocation8 + $0xb0] sm:$0xff]
    %v114 = vld [vmem:[#allocation8 + $0xb8] sm:$0xff]
    %v115 = vld [vmem:[#allocation8 + $0xc0] sm:$0xff]
    %v116 = vld [vmem:[#allocation8 + $0xc8] sm:$0xff]
    %v117 = vld [vmem:[#allocation8 + $0xd0] sm:$0xff]
    %v118 = vld [vmem:[#allocation8 + $0xd8] sm:$0xff]
    %v119 = vld [vmem:[#allocation8 + $0xe0] sm:$0xff]
    %v120 = vld [vmem:[#allocation8 + $0xe8] sm:$0xff]
    %v121 = vld [vmem:[#allocation8 + $0xf0] sm:$0xff]
    %v122 = vld [vmem:[#allocation8 + $0xf8] sm:$0xff]
    %v123 = vld [vmem:[#allocation5] sm:$0xf]
    %v124 = vld [vmem:[#allocation10] sm:$0xff]
    %v125 = vld [vmem:[#allocation10 + $0x8] sm:$0xff]
    %v126 = vld [vmem:[#allocation10 + $0x10] sm:$0xff]
    %v127 = vld [vmem:[#allocation10 + $0x18] sm:$0xff]
    %v128 = vld [vmem:[#allocation10 + $0x20] sm:$0xff]
    %v129 = vld [vmem:[#allocation10 + $0x28] sm:$0xff]
    %v130 = vld [vmem:[#allocation10 + $0x30] sm:$0xff]
    %v131 = vld [vmem:[#allocation10 + $0x38] sm:$0xff]
    %v132 = vld [vmem:[#allocation10 + $0x40] sm:$0xff]
    %v133 = vld [vmem:[#allocation10 + $0x48] sm:$0xff]
    %v134 = vld [vmem:[#allocation10 + $0x50] sm:$0xff]
    %v135 = vld [vmem:[#allocation10 + $0x58] sm:$0xff]
    %v136 = vld [vmem:[#allocation10 + $0x60] sm:$0xff]
    %v137 = vld [vmem:[#allocation10 + $0x68] sm:$0xff]
    %v138 = vld [vmem:[#allocation10 + $0x70] sm:$0xff]
    %v139 = vld [vmem:[#allocation10 + $0x78] sm:$0xff]
    %v140 = vld [vmem:[#allocation10 + $0x80] sm:$0xff]
    %v141 = vld [vmem:[#allocation10 + $0x88] sm:$0xff]
    %v142 = vld [vmem:[#allocation10 + $0x90] sm:$0xff]
    %v143 = vld [vmem:[#allocation10 + $0x98] sm:$0xff]
    %v144 = vld [vmem:[#allocation10 + $0xa0] sm:$0xff]
    %v145 = vld [vmem:[#allocation10 + $0xa8] sm:$0xff]
    %v146 = vld [vmem:[#allocation10 + $0xb0] sm:$0xff]
    %v147 = vld [vmem:[#allocation10 + $0xb8] sm:$0xff]
    %v148 = vld [vmem:[#allocation10 + $0xc0] sm:$0xff]
    %v149 = vld [vmem:[#allocation10 + $0xc8] sm:$0xff]
    %v150 = vld [vmem:[#allocation10 + $0xd0] sm:$0xff]
    %v151 = vld [vmem:[#allocation10 + $0xd8] sm:$0xff]
    %v152 = vld [vmem:[#allocation10 + $0xe0] sm:$0xff]
    %v153 = vld [vmem:[#allocation10 + $0xe8] sm:$0xff]
    %v154 = vld [vmem:[#allocation10 + $0xf0] sm:$0xff]
    %v155 = vld [vmem:[#allocation10 + $0xf8] sm:$0xff]
    %v188 = vunpack.c.l.b16 %v124
    %v189 = vunpack.c.h.b16 %v124
    %v190 = vunpack.c.l.b16 %v125
    %v191 = vunpack.c.h.b16 %v125
    %v192 = vunpack.c.l.b16 %v126
    %v193 = vunpack.c.h.b16 %v126
    %v194 = vunpack.c.l.b16 %v127
    %v195 = vunpack.c.h.b16 %v127
    %v196 = vunpack.c.l.b16 %v128
    %v197 = vunpack.c.h.b16 %v128
    %v198 = vunpack.c.l.b16 %v129
    %v199 = vunpack.c.h.b16 %v129
    %v200 = vunpack.c.l.b16 %v130
    %v201 = vunpack.c.h.b16 %v130
    %v202 = vunpack.c.l.b16 %v131
    %v203 = vunpack.c.h.b16 %v131
    %v204 = vunpack.c.l.b16 %v132
    %v205 = vunpack.c.h.b16 %v132
    %v206 = vunpack.c.l.b16 %v133
    %v207 = vunpack.c.h.b16 %v133
    %v208 = vunpack.c.l.b16 %v134
    %v209 = vunpack.c.h.b16 %v134
    %v210 = vunpack.c.l.b16 %v135
    %v211 = vunpack.c.h.b16 %v135
    %v212 = vunpack.c.l.b16 %v136
    %v213 = vunpack.c.h.b16 %v136
    %v214 = vunpack.c.l.b16 %v137
    %v215 = vunpack.c.h.b16 %v137
    %v216 = vunpack.c.l.b16 %v138
    %v217 = vunpack.c.h.b16 %v138
    %v218 = vunpack.c.l.b16 %v139
    %v219 = vunpack.c.h.b16 %v139
    %v220 = vunpack.c.l.b16 %v140
    %v221 = vunpack.c.h.b16 %v140
    %v222 = vunpack.c.l.b16 %v141
    %v223 = vunpack.c.h.b16 %v141
    %v224 = vunpack.c.l.b16 %v142
    %v225 = vunpack.c.h.b16 %v142
    %v226 = vunpack.c.l.b16 %v143
    %v227 = vunpack.c.h.b16 %v143
    %v228 = vunpack.c.l.b16 %v144
    %v229 = vunpack.c.h.b16 %v144
    %v230 = vunpack.c.l.b16 %v145
    %v231 = vunpack.c.h.b16 %v145
    %v232 = vunpack.c.l.b16 %v146
    %v233 = vunpack.c.h.b16 %v146
    %v234 = vunpack.c.l.b16 %v147
    %v235 = vunpack.c.h.b16 %v147
    %v236 = vunpack.c.l.b16 %v148
    %v237 = vunpack.c.h.b16 %v148
    %v238 = vunpack.c.l.b16 %v149
    %v239 = vunpack.c.h.b16 %v149
    %v240 = vunpack.c.l.b16 %v150
    %v241 = vunpack.c.h.b16 %v150
    %v242 = vunpack.c.l.b16 %v151
    %v243 = vunpack.c.h.b16 %v151
    %v244 = vunpack.c.l.b16 %v152
    %v245 = vunpack.c.h.b16 %v152
    %v246 = vunpack.c.l.b16 %v153
    %v247 = vunpack.c.h.b16 %v153
    %v248 = vunpack.c.l.b16 %v154
    %v249 = vunpack.c.h.b16 %v154
    %v250 = vunpack.c.l.b16 %v155
    %v251 = vunpack.c.h.b16 %v155
    %v252 = vpack.c.b16 %v192, %v188
    %v253 = vpack.c.b16 %v193, %v189
    %v254 = vpack.c.b16 %v194, %v190
    %v255 = vpack.c.b16 %v195, %v191
    %v256 = vpack.c.b16 %v200, %v196
    %v257 = vpack.c.b16 %v201, %v197
    %v258 = vpack.c.b16 %v202, %v198
    %v259 = vpack.c.b16 %v203, %v199
    %v260 = vpack.c.b16 %v208, %v204
    %v261 = vpack.c.b16 %v209, %v205
    %v262 = vpack.c.b16 %v210, %v206
    %v263 = vpack.c.b16 %v211, %v207
    %v264 = vpack.c.b16 %v216, %v212
    %v265 = vpack.c.b16 %v217, %v213
    %v266 = vpack.c.b16 %v218, %v214
    %v267 = vpack.c.b16 %v219, %v215
    %v268 = vpack.c.b16 %v224, %v220
    %v269 = vpack.c.b16 %v225, %v221
    %v270 = vpack.c.b16 %v226, %v222
    %v271 = vpack.c.b16 %v227, %v223
    %v272 = vpack.c.b16 %v232, %v228
    %v273 = vpack.c.b16 %v233, %v229
    %v274 = vpack.c.b16 %v234, %v230
    %v275 = vpack.c.b16 %v235, %v231
    %v276 = vpack.c.b16 %v240, %v236
    %v277 = vpack.c.b16 %v241, %v237
    %v278 = vpack.c.b16 %v242, %v238
    %v279 = vpack.c.b16 %v243, %v239
    %v280 = vpack.c.b16 %v248, %v244
    %v281 = vpack.c.b16 %v249, %v245
    %v282 = vpack.c.b16 %v250, %v246
    %v283 = vpack.c.b16 %v251, %v247
    %316 = vmatprep.subr.bf16.mxu0 %v253
    %317 = vmatpush1.bf16.msra.mxu0 %v252
    %318 = vmatprep.subr.bf16.mxu0 %v257
    %319 = vmatpush1.bf16.msra.mxu0 %v256
    %320 = vmatprep.subr.bf16.mxu0 %v261
    %321 = vmatpush1.bf16.msra.mxu0 %v260
    %322 = vmatprep.subr.bf16.mxu0 %v265
    %323 = vmatpush1.bf16.msra.mxu0 %v264
    %324 = vmatprep.subr.bf16.mxu0 %v269
    %325 = vmatpush1.bf16.msra.mxu0 %v268
    %326 = vmatprep.subr.bf16.mxu0 %v273
    %327 = vmatpush1.bf16.msra.mxu0 %v272
    %328 = vmatprep.subr.bf16.mxu0 %v277
    %329 = vmatpush1.bf16.msra.mxu0 %v276
    %330 = vmatprep.subr.bf16.mxu0 %v281
    %331 = vmatpush1.bf16.msra.mxu0 %v280
    %332 = vmatprep.subr.bf16.mxu0 0
    %333 = vmatpush1.bf16.msra.mxu0 0
    %334 = vmatprep.subr.bf16.mxu0 0
    %335 = vmatpush1.bf16.msra.mxu0 0
    %336 = vmatprep.subr.bf16.mxu0 0
    %337 = vmatpush1.bf16.msra.mxu0 0
    %338 = vmatprep.subr.bf16.mxu0 0
    %339 = vmatpush1.bf16.msra.mxu0 0
    %340 = vmatprep.subr.bf16.mxu0 0
    %341 = vmatpush1.bf16.msra.mxu0 0
    %342 = vmatprep.subr.bf16.mxu0 0
    %343 = vmatpush1.bf16.msra.mxu0 0
    %344 = vmatprep.subr.bf16.mxu0 0
    %345 = vmatpush1.bf16.msra.mxu0 0
    %346 = vmatprep.subr.bf16.mxu0 0
    %347 = vmatpush1.bf16.msra.mxu0 0
    %348 = vmatprep.mubr.bf16.mxu0 0
    %349 = vmatmul.mubr.bf16.gmra.mrb[0].mxu0 %v123
    %v350 = vpop.f32.mrb[0].mxu0
    %v351 = vadd.f32 0.0, %v350
    %v352 = vpop.f32.mrb[0].mxu0
    %v353 = vadd.f32 0.0, %v352
    %v354 = vpop.f32.mrb[0].mxu0
    %v355 = vpop.f32.mrb[0].mxu0
    %356 = vdwg.mxu0
    %357 = vmatprep.subr.bf16.mxu0 %v255
    %358 = vmatpush1.bf16.msra.mxu0 %v254
    %359 = vmatprep.subr.bf16.mxu0 %v259
    %360 = vmatpush1.bf16.msra.mxu0 %v258
    %361 = vmatprep.subr.bf16.mxu0 %v263
    %362 = vmatpush1.bf16.msra.mxu0 %v262
    %363 = vmatprep.subr.bf16.mxu0 %v267
    %364 = vmatpush1.bf16.msra.mxu0 %v266
    %365 = vmatprep.subr.bf16.mxu0 %v271
    %366 = vmatpush1.bf16.msra.mxu0 %v270
    %367 = vmatprep.subr.bf16.mxu0 %v275
    %368 = vmatpush1.bf16.msra.mxu0 %v274
    %369 = vmatprep.subr.bf16.mxu0 %v279
    %370 = vmatpush1.bf16.msra.mxu0 %v278
    %371 = vmatprep.subr.bf16.mxu0 %v283
    %372 = vmatpush1.bf16.msra.mxu0 %v282
    %373 = vmatprep.subr.bf16.mxu0 0
    %374 = vmatpush1.bf16.msra.mxu0 0
    %375 = vmatprep.subr.bf16.mxu0 0
    %376 = vmatpush1.bf16.msra.mxu0 0
    %377 = vmatprep.subr.bf16.mxu0 0
    %378 = vmatpush1.bf16.msra.mxu0 0
    %379 = vmatprep.subr.bf16.mxu0 0
    %380 = vmatpush1.bf16.msra.mxu0 0
    %381 = vmatprep.subr.bf16.mxu0 0
    %382 = vmatpush1.bf16.msra.mxu0 0
    %383 = vmatprep.subr.bf16.mxu0 0
    %384 = vmatpush1.bf16.msra.mxu0 0
    %385 = vmatprep.subr.bf16.mxu0 0
    %386 = vmatpush1.bf16.msra.mxu0 0
    %387 = vmatprep.subr.bf16.mxu0 0
    %388 = vmatpush1.bf16.msra.mxu0 0
    %389 = vmatprep.mubr.bf16.mxu0 0
    %390 = vmatmul.mubr.bf16.gmra.mrb[0].mxu0 %v123
    %v391 = vpop.f32.mrb[0].mxu0
    %v392 = vadd.f32 0.0, %v391
    %v393 = vpop.f32.mrb[0].mxu0
    %v394 = vadd.f32 0.0, %v393
    %v395 = vpop.f32.mrb[0].mxu0
    %v396 = vpop.f32.mrb[0].mxu0
    %397 = vdwg.mxu0
    %v430 = vunpack.c.l.b16 %v91
    %v431 = vunpack.c.h.b16 %v91
    %v432 = vunpack.c.l.b16 %v92
    %v433 = vunpack.c.h.b16 %v92
    %v434 = vunpack.c.l.b16 %v93
    %v435 = vunpack.c.h.b16 %v93
    %v436 = vunpack.c.l.b16 %v94
    %v437 = vunpack.c.h.b16 %v94
    %v438 = vunpack.c.l.b16 %v95
    %v439 = vunpack.c.h.b16 %v95
    %v440 = vunpack.c.l.b16 %v96
    %v441 = vunpack.c.h.b16 %v96
    %v442 = vunpack.c.l.b16 %v97
    %v443 = vunpack.c.h.b16 %v97
    %v444 = vunpack.c.l.b16 %v98
    %v445 = vunpack.c.h.b16 %v98
    %v446 = vunpack.c.l.b16 %v99
    %v447 = vunpack.c.h.b16 %v99
    %v448 = vunpack.c.l.b16 %v100
    %v449 = vunpack.c.h.b16 %v100
    %v450 = vunpack.c.l.b16 %v101
    %v451 = vunpack.c.h.b16 %v101
    %v452 = vunpack.c.l.b16 %v102
    %v453 = vunpack.c.h.b16 %v102
    %v454 = vunpack.c.l.b16 %v103
    %v455 = vunpack.c.h.b16 %v103
    %v456 = vunpack.c.l.b16 %v104
    %v457 = vunpack.c.h.b16 %v104
    %v458 = vunpack.c.l.b16 %v105
    %v459 = vunpack.c.h.b16 %v105
    %v460 = vunpack.c.l.b16 %v106
    %v461 = vunpack.c.h.b16 %v106
    %v462 = vunpack.c.l.b16 %v107
    %v463 = vunpack.c.h.b16 %v107
    %v464 = vunpack.c.l.b16 %v108
    %v465 = vunpack.c.h.b16 %v108
    %v466 = vunpack.c.l.b16 %v109
    %v467 = vunpack.c.h.b16 %v109
    %v468 = vunpack.c.l.b16 %v110
    %v469 = vunpack.c.h.b16 %v110
    %v470 = vunpack.c.l.b16 %v111
    %v471 = vunpack.c.h.b16 %v111
    %v472 = vunpack.c.l.b16 %v112
    %v473 = vunpack.c.h.b16 %v112
    %v474 = vunpack.c.l.b16 %v113
    %v475 = vunpack.c.h.b16 %v113
    %v476 = vunpack.c.l.b16 %v114
    %v477 = vunpack.c.h.b16 %v114
    %v478 = vunpack.c.l.b16 %v115
    %v479 = vunpack.c.h.b16 %v115
    %v480 = vunpack.c.l.b16 %v116
    %v481 = vunpack.c.h.b16 %v116
    %v482 = vunpack.c.l.b16 %v117
    %v483 = vunpack.c.h.b16 %v117
    %v484 = vunpack.c.l.b16 %v118
    %v485 = vunpack.c.h.b16 %v118
    %v486 = vunpack.c.l.b16 %v119
    %v487 = vunpack.c.h.b16 %v119
    %v488 = vunpack.c.l.b16 %v120
    %v489 = vunpack.c.h.b16 %v120
    %v490 = vunpack.c.l.b16 %v121
    %v491 = vunpack.c.h.b16 %v121
    %v492 = vunpack.c.l.b16 %v122
    %v493 = vunpack.c.h.b16 %v122
    %v494 = vpack.c.b16 %v434, %v430
    %v495 = vpack.c.b16 %v435, %v431
    %v496 = vpack.c.b16 %v436, %v432
    %v497 = vpack.c.b16 %v437, %v433
    %v498 = vpack.c.b16 %v442, %v438
    %v499 = vpack.c.b16 %v443, %v439
    %v500 = vpack.c.b16 %v444, %v440
    %v501 = vpack.c.b16 %v445, %v441
    %v502 = vpack.c.b16 %v450, %v446
    %v503 = vpack.c.b16 %v451, %v447
    %v504 = vpack.c.b16 %v452, %v448
    %v505 = vpack.c.b16 %v453, %v449
    %v506 = vpack.c.b16 %v458, %v454
    %v507 = vpack.c.b16 %v459, %v455
    %v508 = vpack.c.b16 %v460, %v456
    %v509 = vpack.c.b16 %v461, %v457
    %v510 = vpack.c.b16 %v466, %v462
    %v511 = vpack.c.b16 %v467, %v463
    %v512 = vpack.c.b16 %v468, %v464
    %v513 = vpack.c.b16 %v469, %v465
    %v514 = vpack.c.b16 %v474, %v470
    %v515 = vpack.c.b16 %v475, %v471
    %v516 = vpack.c.b16 %v476, %v472
    %v517 = vpack.c.b16 %v477, %v473
    %v518 = vpack.c.b16 %v482, %v478
    %v519 = vpack.c.b16 %v483, %v479
    %v520 = vpack.c.b16 %v484, %v480
    %v521 = vpack.c.b16 %v485, %v481
    %v522 = vpack.c.b16 %v490, %v486
    %v523 = vpack.c.b16 %v491, %v487
    %v524 = vpack.c.b16 %v492, %v488
    %v525 = vpack.c.b16 %v493, %v489
    %558 = vmatprep.subr.bf16.mxu0 %v495
    %559 = vmatpush1.bf16.msra.mxu0 %v494
    %560 = vmatprep.subr.bf16.mxu0 %v499
    %561 = vmatpush1.bf16.msra.mxu0 %v498
    %562 = vmatprep.subr.bf16.mxu0 %v503
    %563 = vmatpush1.bf16.msra.mxu0 %v502
    %564 = vmatprep.subr.bf16.mxu0 %v507
    %565 = vmatpush1.bf16.msra.mxu0 %v506
    %566 = vmatprep.subr.bf16.mxu0 %v511
    %567 = vmatpush1.bf16.msra.mxu0 %v510
    %568 = vmatprep.subr.bf16.mxu0 %v515
    %569 = vmatpush1.bf16.msra.mxu0 %v514
    %570 = vmatprep.subr.bf16.mxu0 %v519
    %571 = vmatpush1.bf16.msra.mxu0 %v518
    %572 = vmatprep.subr.bf16.mxu0 %v523
    %573 = vmatpush1.bf16.msra.mxu0 %v522
    %574 = vmatprep.subr.bf16.mxu0 0
    %575 = vmatpush1.bf16.msra.mxu0 0
    %576 = vmatprep.subr.bf16.mxu0 0
    %577 = vmatpush1.bf16.msra.mxu0 0
    %578 = vmatprep.subr.bf16.mxu0 0
    %579 = vmatpush1.bf16.msra.mxu0 0
    %580 = vmatprep.subr.bf16.mxu0 0
    %581 = vmatpush1.bf16.msra.mxu0 0
    %582 = vmatprep.subr.bf16.mxu0 0
    %583 = vmatpush1.bf16.msra.mxu0 0
    %584 = vmatprep.subr.bf16.mxu0 0
    %585 = vmatpush1.bf16.msra.mxu0 0
    %586 = vmatprep.subr.bf16.mxu0 0
    %587 = vmatpush1.bf16.msra.mxu0 0
    %588 = vmatprep.subr.bf16.mxu0 0
    %589 = vmatpush1.bf16.msra.mxu0 0
    %590 = vmatprep.mubr.bf16.mxu0 0
    %591 = vmatmul.mubr.bf16.gmra.mrb[0].mxu0 %v90
    %v592 = vpop.f32.mrb[0].mxu0
    %v593 = vadd.f32 %v351, %v592
    %v594 = vpop.f32.mrb[0].mxu0
    %v595 = vadd.f32 %v353, %v594
    %v596 = vpop.f32.mrb[0].mxu0
    %v597 = vpop.f32.mrb[0].mxu0
    %598 = vdwg.mxu0
    %599 = vmatprep.subr.bf16.mxu0 %v497
    %600 = vmatpush1.bf16.msra.mxu0 %v496
    %601 = vmatprep.subr.bf16.mxu0 %v501
    %602 = vmatpush1.bf16.msra.mxu0 %v500
    %603 = vmatprep.subr.bf16.mxu0 %v505
    %604 = vmatpush1.bf16.msra.mxu0 %v504
    %605 = vmatprep.subr.bf16.mxu0 %v509
    %606 = vmatpush1.bf16.msra.mxu0 %v508
    %607 = vmatprep.subr.bf16.mxu0 %v513
    %608 = vmatpush1.bf16.msra.mxu0 %v512
    %609 = vmatprep.subr.bf16.mxu0 %v517
    %610 = vmatpush1.bf16.msra.mxu0 %v516
    %611 = vmatprep.subr.bf16.mxu0 %v521
    %612 = vmatpush1.bf16.msra.mxu0 %v520
    %613 = vmatprep.subr.bf16.mxu0 %v525
    %614 = vmatpush1.bf16.msra.mxu0 %v524
    %615 = vmatprep.subr.bf16.mxu0 0
    %616 = vmatpush1.bf16.msra.mxu0 0
    %617 = vmatprep.subr.bf16.mxu0 0
    %618 = vmatpush1.bf16.msra.mxu0 0
    %619 = vmatprep.subr.bf16.mxu0 0
    %620 = vmatpush1.bf16.msra.mxu0 0
    %621 = vmatprep.subr.bf16.mxu0 0
    %622 = vmatpush1.bf16.msra.mxu0 0
    %623 = vmatprep.subr.bf16.mxu0 0
    %624 = vmatpush1.bf16.msra.mxu0 0
    %625 = vmatprep.subr.bf16.mxu0 0
    %626 = vmatpush1.bf16.msra.mxu0 0
    %627 = vmatprep.subr.bf16.mxu0 0
    %628 = vmatpush1.bf16.msra.mxu0 0
    %629 = vmatprep.subr.bf16.mxu0 0
    %630 = vmatpush1.bf16.msra.mxu0 0
    %631 = vmatprep.mubr.bf16.mxu0 0
    %632 = vmatmul.mubr.bf16.gmra.mrb[0].mxu0 %v90
    %v633 = vpop.f32.mrb[0].mxu0
    %v634 = vadd.f32 %v392, %v633
    %v635 = vpop.f32.mrb[0].mxu0
    %v636 = vadd.f32 %v394, %v635
    %v637 = vpop.f32.mrb[0].mxu0
    %v638 = vpop.f32.mrb[0].mxu0
    %639 = vdwg.mxu0
    %v640 = vld [vmem:[%s5] sm:$0xf]
    %v642 = vlaneseq
    %v643 = vshrl.u32 %v642, 7
    %v644 = vsub.s32 0, %v643
    %v645 = vrot.slane %v640, %v644
    %v646 = vlaneseq
    %v647 = vshrl.u32 %v646, 7
    %v648 = vsub.s32 1, %v647
    %v649 = vrot.slane %v640, %v648
    %v650 = vlaneseq
    %v651 = vshrl.u32 %v650, 7
    %v652 = vsub.s32 2, %v651
    %v653 = vrot.slane %v640, %v652
    %v654 = vlaneseq
    %v655 = vshrl.u32 %v654, 7
    %v656 = vsub.s32 3, %v655
    %v657 = vrot.slane %v640, %v656
    %v662 = vadd.f32 %v593, %v645
    %v663 = vadd.f32 %v595, %v649
    %v664 = vadd.f32 %v634, %v653
    %v665 = vadd.f32 %v636, %v657
    %v666 = vld [vmem:[#allocation7] sm:$0xff]
    %v667 = vxor.u32 %v662, 2147483648
    %v668 = vmul.f32 %v667, 1.442695
    %v669 = vpow.pop %v668
    %v670 = vadd.f32 %v669, 1.0
    %v671 = vrcp.pop %v670
    %v672 = vmul.f32 1.0, %v671
    %v673 = vxor.u32 %v663, 2147483648
    %v674 = vmul.f32 %v673, 1.442695
    %v675 = vpow.pop %v674
    %v676 = vadd.f32 %v675, 1.0
    %v677 = vrcp.pop %v676
    %v678 = vmul.f32 1.0, %v677
    %v679 = vtanh.pop %v664
    %v680 = vxor.u32 %v665, 2147483648
    %v681 = vmul.f32 %v680, 1.442695
    %v682 = vpow.pop %v681
    %v683 = vadd.f32 %v682, 1.0
    %v684 = vrcp.pop %v683
    %v685 = vmul.f32 1.0, %v684
    %v686 = vmul.f32 %v666, %v678
    %v687 = vmul.f32 %v672, %v679
    %v688 = vadd.f32 %v686, %v687
    %v689 = vtanh.pop %v688
    %v690 = vmul.f32 %v685, %v689
    %691 = vst [vmem:[#allocation11] sm:$0xff] %v690
    %692 = vst [vmem:[#allocation12] sm:$0xff] %v688
    // Predicated region
    $region46: #{tpu_custom_call.1} parent=1 // pred_check
      _
    $region47: #{tpu_custom_call.1} parent=1 // pred_check_branch
      %694 = sbr.rel (0) target = $region49
    $region48: #{tpu_custom_call.1} parent=1 // pred_region
      %s696 = ssub.s32 128, 128
      %697 = vsyncadd [#allocation4], %s696
      %s699 = sshll.u32 [#allocation11], 4
      %s700 = int_to_ptr.vmem [resolvable:$true] %s699
      %702 = dma.vmem_to_hbm [thread:$0]  %s700, 128, %s6, [#allocation4]
    $region49: #{tpu_custom_call.1} parent=1 // pred_fallthru
      _
    // Predicated region
    $region50: #{tpu_custom_call.1} parent=1 // pred_check
      _
    $region51: #{tpu_custom_call.1} parent=1 // pred_check_branch
      %704 = sbr.rel (0) target = $region53
    $region52: #{tpu_custom_call.1} parent=1 // pred_region
      %s706 = ssub.s32 128, 128
      %707 = vsyncadd [#allocation13], %s706
      %s709 = sshll.u32 [#allocation12], 4
      %s710 = int_to_ptr.vmem [resolvable:$true] %s709
      %712 = dma.vmem_to_hbm [thread:$0]  %s710, 128, %s7, [#allocation13]
    $region53: #{tpu_custom_call.1} parent=1 // pred_fallthru
      _
    // Predicated region
    $region54: #{tpu_custom_call.1} parent=1 // pred_check
      _
    $region55: #{tpu_custom_call.1} parent=1 // pred_check_branch
      %714 = sbr.rel (0) target = $region57
    $region56: #{tpu_custom_call.1} parent=1 // pred_region
      %715 = dma.done [#allocation4], 128
    $region57: #{tpu_custom_call.1} parent=1 // pred_fallthru
      _
    // Predicated region
    $region58: #{tpu_custom_call.1} parent=1 // pred_check
      _
    $region59: #{tpu_custom_call.1} parent=1 // pred_check_branch
      %717 = sbr.rel (0) target = $region61
    $region60: #{tpu_custom_call.1} parent=1 // pred_region
      %718 = dma.done [#allocation13], 128
    $region61: #{tpu_custom_call.1} parent=1 // pred_fallthru
      _
    %719 = vsyncpa [#allocation3], 1
    %720 = vsyncpa [#allocation6], 1
    %721 = vsyncpa [#allocation9], 1
    %722 = vsyncpa [#allocation4], 1
    %723 = vsyncpa [#allocation13], 1

// kernel: tpu_custom_call.1
$region0: #{tpu_custom_call.1}
  #allocation0 [shape = 'u32[]', space=smem, size = 0x4, offset = 0x4, fixed_abs, tag = 'smem constant byte address 0x4 - core index']
  #allocation1 [shape = 'u32[144,128]{1,0:T(1,128)}', space=vmem, size = 0x12000, scoped, tag = 'internal scratch']
  %s0 = inlined_call_operand.hbm [shape: bf16[8,128], index: 0, kind: input, shape index: {}]
  %s1 = inlined_call_operand.hbm [shape: bf16[8,128], index: 1, kind: input, shape index: {}]
  %s2 = inlined_call_operand.hbm [shape: f32[8,128], index: 2, kind: input, shape index: {}]
  %s3 = inlined_call_operand.hbm [shape: bf16[128,512], index: 3, kind: input, shape index: {}]
  %s4 = inlined_call_operand.hbm [shape: bf16[128,512], index: 4, kind: input, shape index: {}]
  %s5 = inlined_call_operand.vmem [shape: f32[1,512], index: 5, kind: input, shape index: {}]
  %s6 = inlined_call_operand.hbm [shape: f32[8,128], index: 6, kind: output, shape index: {0}]
  %s7 = inlined_call_operand.hbm [shape: f32[8,128], index: 7, kind: output, shape index: {1}]
  %8 = xla_tuple %s6, %s7
  %s9 = sld [smem:[#allocation0]]
  $region62: #{tpu_custom_call.1} parent=0
    _
  %s11 = ssub.s32 1, %s9
  %s12 = scalar_select 0, %s11, %s9
  $region1: #{tpu_custom_call.1} parent=0
    #allocation2 [shape = 'u8[2048]{0}', space=vmem, size = 0x800, scoped, tag = 'input window, operand 0, single buffered']
    #allocation3 [shape = 's32[1]{0}', space=sflag, size = 0x4, scoped, tag = 'scoped memory for tpu_custom_call.1']
    #allocation4 [shape = 's32[1]{0}', space=sflag, size = 0x4, scoped, tag = 'scoped memory for tpu_custom_call.1']
    #allocation5 [shape = 'u8[2048]{0}', space=vmem, size = 0x800, scoped, tag = 'input window, operand 1, single buffered']
    #allocation6 [shape = 's32[1]{0}', space=sflag, size = 0x4, scoped, tag = 'scoped memory for tpu_custom_call.1']
    #allocation7 [shape = 'u8[4096]{0}', space=vmem, size = 0x1000, scoped, tag = 'input window, operand 2, single buffered']
    #allocation8 [shape = 'u8[131072]{0}', space=vmem, size = 0x20000, scoped, tag = 'input window, operand 3, single buffered']
    #allocation9 [shape = 's32[1]{0}', space=sflag, size = 0x4, scoped, tag = 'scoped memory for tpu_custom_call.1']
    #allocation10 [shape = 'u8[131072]{0}', space=vmem, size = 0x20000, scoped, tag = 'input window, operand 4, single buffered']
    #allocation11 [shape = 'u8[4096]{0}', space=vmem, size = 0x1000, scoped, tag = 'output window, operand 0, single buffered']
    #allocation12 [shape = 'u8[4096]{0}', space=vmem, size = 0x1000, scoped, tag = 'output window, operand 1, single buffered']
    #allocation13 [shape = 's32[1]{0}', space=sflag, size = 0x4, scoped, tag = 'scoped memory for tpu_custom_call.1']
    %13 = vsyncpa [#allocation3], 0
    %14 = vsyncpa [#allocation6], 0
    %15 = vsyncpa [#allocation9], 0
    %16 = vsyncpa [#allocation4], 0
    %17 = vsyncpa [#allocation13], 0
    // Predicated region
    $region2: #{tpu_custom_call.1} parent=1 // pred_check
      _
    $region3: #{tpu_custom_call.1} parent=1 // pred_check_branch
      %19 = sbr.rel (0) target = $region5
    $region4: #{tpu_custom_call.1} parent=1 // pred_region
      %s21 = ssub.s32 64, 64
      %22 = vsyncadd [#allocation3], %s21
      %s24 = sshll.u32 [#allocation2], 4
      %s25 = int_to_ptr.vmem [resolvable:$true] %s24
      %27 = dma.hbm_to_vmem [thread:$0]  %s0, 64, %s25, [#allocation3]
    $region5: #{tpu_custom_call.1} parent=1 // pred_fallthru
      _
    // Predicated region
    $region6: #{tpu_custom_call.1} parent=1 // pred_check
      _
    $region7: #{tpu_custom_call.1} parent=1 // pred_check_branch
      %29 = sbr.rel (0) target = $region9
    $region8: #{tpu_custom_call.1} parent=1 // pred_region
      %s31 = ssub.s32 64, 64
      %32 = vsyncadd [#allocation6], %s31
      %s34 = sshll.u32 [#allocation5], 4
      %s35 = int_to_ptr.vmem [resolvable:$true] %s34
      %37 = dma.hbm_to_vmem [thread:$0]  %s1, 64, %s35, [#allocation6]
    $region9: #{tpu_custom_call.1} parent=1 // pred_fallthru
      _
    // Predicated region
    $region10: #{tpu_custom_call.1} parent=1 // pred_check
      _
    $region11: #{tpu_custom_call.1} parent=1 // pred_check_branch
      %39 = sbr.rel (0) target = $region13
    $region12: #{tpu_custom_call.1} parent=1 // pred_region
      %s41 = ssub.s32 128, 128
      %42 = vsyncadd [#allocation6], %s41
      %s44 = sshll.u32 [#allocation7], 4
      %s45 = int_to_ptr.vmem [resolvable:$true] %s44
      %47 = dma.hbm_to_vmem [thread:$0]  %s2, 128, %s45, [#allocation6]
    $region13: #{tpu_custom_call.1} parent=1 // pred_fallthru
      _
    // Predicated region
    $region14: #{tpu_custom_call.1} parent=1 // pred_check
      _
    $region15: #{tpu_custom_call.1} parent=1 // pred_check_branch
      %49 = sbr.rel (0) target = $region17
    $region16: #{tpu_custom_call.1} parent=1 // pred_region
      %s51 = ssub.s32 4096, 4096
      %52 = vsyncadd [#allocation9], %s51
      %s53 = sshll.u32 [#allocation8], 4
      %s54 = int_to_ptr.vmem [resolvable:$true] %s53
      %59 = dma.hbm_to_vmem [thread:$0]  %s3, 4096, %s54, [#allocation9], 256, 256, 16
    $region17: #{tpu_custom_call.1} parent=1 // pred_fallthru
      _
    // Predicated region
    $region18: #{tpu_custom_call.1} parent=1 // pred_check
      _
    $region19: #{tpu_custom_call.1} parent=1 // pred_check_branch
      %61 = sbr.rel (0) target = $region21
    $region20: #{tpu_custom_call.1} parent=1 // pred_region
      %s63 = ssub.s32 4096, 4096
      %64 = vsyncadd [#allocation9], %s63
      %s65 = sshll.u32 [#allocation10], 4
      %s66 = int_to_ptr.vmem [resolvable:$true] %s65
      %71 = dma.hbm_to_vmem [thread:$0]  %s4, 4096, %s66, [#allocation9], 256, 256, 16
    $region21: #{tpu_custom_call.1} parent=1 // pred_fallthru
      _
    // Predicated region
    $region22: #{tpu_custom_call.1} parent=1 // pred_check
      _
    $region23: #{tpu_custom_call.1} parent=1 // pred_check_branch
      %73 = sbr.rel (0) target = $region25
    $region24: #{tpu_custom_call.1} parent=1 // pred_region
      _
    $region25: #{tpu_custom_call.1} parent=1 // pred_fallthru
      _
    // Predicated region
    $region26: #{tpu_custom_call.1} parent=1 // pred_check
      _
    $region27: #{tpu_custom_call.1} parent=1 // pred_check_branch
      %75 = sbr.rel (0) target = $region29
    $region28: #{tpu_custom_call.1} parent=1 // pred_region
      %76 = dma.done [#allocation3], 64
    $region29: #{tpu_custom_call.1} parent=1 // pred_fallthru
      _
    // Predicated region
    $region30: #{tpu_custom_call.1} parent=1 // pred_check
      _
    $region31: #{tpu_custom_call.1} parent=1 // pred_check_branch
      %78 = sbr.rel (0) target = $region33
    $region32: #{tpu_custom_call.1} parent=1 // pred_region
      %79 = dma.done [#allocation6], 64
    $region33: #{tpu_custom_call.1} parent=1 // pred_fallthru
      _
    // Predicated region
    $region34: #{tpu_custom_call.1} parent=1 // pred_check
      _
    $region35: #{tpu_custom_call.1} parent=1 // pred_check_branch
      %81 = sbr.rel (0) target = $region37
    $region36: #{tpu_custom_call.1} parent=1 // pred_region
      %82 = dma.done [#allocation6], 128
    $region37: #{tpu_custom_call.1} parent=1 // pred_fallthru
      _
    // Predicated region
    $region38: #{tpu_custom_call.1} parent=1 // pred_check
      _
    $region39: #{tpu_custom_call.1} parent=1 // pred_check_branch
      %84 = sbr.rel (0) target = $region41
    $region40: #{tpu_custom_call.1} parent=1 // pred_region
      %85 = dma.done [#allocation9], 4096
    $region41: #{tpu_custom_call.1} parent=1 // pred_fallthru
      _
    // Predicated region
    $region42: #{tpu_custom_call.1} parent=1 // pred_check
      _
    $region43: #{tpu_custom_call.1} parent=1 // pred_check_branch
      %87 = sbr.rel (0) target = $region45
    $region44: #{tpu_custom_call.1} parent=1 // pred_region
      %88 = dma.done [#allocation9], 4096
    $region45: #{tpu_custom_call.1} parent=1 // pred_fallthru
      _
    %v90 = vld [vmem:[#allocation2] sm:$0xf]
    %v91 = vld [vmem:[#allocation8] sm:$0xff]
    %v92 = vld [vmem:[#allocation8 + $0x8] sm:$0xff]
    %v93 = vld [vmem:[#allocation8 + $0x10] sm:$0xff]
    %v94 = vld [vmem:[#allocation8 + $0x18] sm:$0xff]
    %v95 = vld [vmem:[#allocation8 + $0x20] sm:$0xff]
    %v96 = vld [vmem:[#allocation8 + $0x28] sm:$0xff]
    %v97 = vld [vmem:[#allocation8 + $0x30] sm:$0xff]
    %v98 = vld [vmem:[#allocation8 + $0x38] sm:$0xff]
    %v99 = vld [vmem:[#allocation8 + $0x40] sm:$0xff]
    %v100 = vld [vmem:[#allocation8 + $0x48] sm:$0xff]
    %v101 = vld [vmem:[#allocation8 + $0x50] sm:$0xff]
    %v102 = vld [vmem:[#allocation8 + $0x58] sm:$0xff]
    %v103 = vld [vmem:[#allocation8 + $0x60] sm:$0xff]
    %v104 = vld [vmem:[#allocation8 + $0x68] sm:$0xff]
    %v105 = vld [vmem:[#allocation8 + $0x70] sm:$0xff]
    %v106 = vld [vmem:[#allocation8 + $0x78] sm:$0xff]
    %v107 = vld [vmem:[#allocation8 + $0x80] sm:$0xff]
    %v108 = vld [vmem:[#allocation8 + $0x88] sm:$0xff]
    %v109 = vld [vmem:[#allocation8 + $0x90] sm:$0xff]
    %v110 = vld [vmem:[#allocation8 + $0x98] sm:$0xff]
    %v111 = vld [vmem:[#allocation8 + $0xa0] sm:$0xff]
    %v112 = vld [vmem:[#allocation8 + $0xa8] sm:$0xff]
    %v113 = vld [vmem:[#allocation8 + $0xb0] sm:$0xff]
    %v114 = vld [vmem:[#allocation8 + $0xb8] sm:$0xff]
    %v115 = vld [vmem:[#allocation8 + $0xc0] sm:$0xff]
    %v116 = vld [vmem:[#allocation8 + $0xc8] sm:$0xff]
    %v117 = vld [vmem:[#allocation8 + $0xd0] sm:$0xff]
    %v118 = vld [vmem:[#allocation8 + $0xd8] sm:$0xff]
    %v119 = vld [vmem:[#allocation8 + $0xe0] sm:$0xff]
    %v120 = vld [vmem:[#allocation8 + $0xe8] sm:$0xff]
    %v121 = vld [vmem:[#allocation8 + $0xf0] sm:$0xff]
    %v122 = vld [vmem:[#allocation8 + $0xf8] sm:$0xff]
    %v123 = vld [vmem:[#allocation5] sm:$0xf]
    %v124 = vld [vmem:[#allocation10] sm:$0xff]
    %v125 = vld [vmem:[#allocation10 + $0x8] sm:$0xff]
    %v126 = vld [vmem:[#allocation10 + $0x10] sm:$0xff]
    %v127 = vld [vmem:[#allocation10 + $0x18] sm:$0xff]
    %v128 = vld [vmem:[#allocation10 + $0x20] sm:$0xff]
    %v129 = vld [vmem:[#allocation10 + $0x28] sm:$0xff]
    %v130 = vld [vmem:[#allocation10 + $0x30] sm:$0xff]
    %v131 = vld [vmem:[#allocation10 + $0x38] sm:$0xff]
    %v132 = vld [vmem:[#allocation10 + $0x40] sm:$0xff]
    %v133 = vld [vmem:[#allocation10 + $0x48] sm:$0xff]
    %v134 = vld [vmem:[#allocation10 + $0x50] sm:$0xff]
    %v135 = vld [vmem:[#allocation10 + $0x58] sm:$0xff]
    %v136 = vld [vmem:[#allocation10 + $0x60] sm:$0xff]
    %v137 = vld [vmem:[#allocation10 + $0x68] sm:$0xff]
    %v138 = vld [vmem:[#allocation10 + $0x70] sm:$0xff]
    %v139 = vld [vmem:[#allocation10 + $0x78] sm:$0xff]
    %v140 = vld [vmem:[#allocation10 + $0x80] sm:$0xff]
    %v141 = vld [vmem:[#allocation10 + $0x88] sm:$0xff]
    %v142 = vld [vmem:[#allocation10 + $0x90] sm:$0xff]
    %v143 = vld [vmem:[#allocation10 + $0x98] sm:$0xff]
    %v144 = vld [vmem:[#allocation10 + $0xa0] sm:$0xff]
    %v145 = vld [vmem:[#allocation10 + $0xa8] sm:$0xff]
    %v146 = vld [vmem:[#allocation10 + $0xb0] sm:$0xff]
    %v147 = vld [vmem:[#allocation10 + $0xb8] sm:$0xff]
    %v148 = vld [vmem:[#allocation10 + $0xc0] sm:$0xff]
    %v149 = vld [vmem:[#allocation10 + $0xc8] sm:$0xff]
    %v150 = vld [vmem:[#allocation10 + $0xd0] sm:$0xff]
    %v151 = vld [vmem:[#allocation10 + $0xd8] sm:$0xff]
    %v152 = vld [vmem:[#allocation10 + $0xe0] sm:$0xff]
    %v153 = vld [vmem:[#allocation10 + $0xe8] sm:$0xff]
    %v154 = vld [vmem:[#allocation10 + $0xf0] sm:$0xff]
    %v155 = vld [vmem:[#allocation10 + $0xf8] sm:$0xff]
    %v188 = vunpack.c.l.b16 %v124
    %v189 = vunpack.c.h.b16 %v124
    %v190 = vunpack.c.l.b16 %v125
    %v191 = vunpack.c.h.b16 %v125
    %v192 = vunpack.c.l.b16 %v126
    %v193 = vunpack.c.h.b16 %v126
    %v194 = vunpack.c.l.b16 %v127
    %v195 = vunpack.c.h.b16 %v127
    %v196 = vunpack.c.l.b16 %v128
    %v197 = vunpack.c.h.b16 %v128
    %v198 = vunpack.c.l.b16 %v129
    %v199 = vunpack.c.h.b16 %v129
    %v200 = vunpack.c.l.b16 %v130
    %v201 = vunpack.c.h.b16 %v130
    %v202 = vunpack.c.l.b16 %v131
    %v203 = vunpack.c.h.b16 %v131
    %v204 = vunpack.c.l.b16 %v132
    %v205 = vunpack.c.h.b16 %v132
    %v206 = vunpack.c.l.b16 %v133
    %v207 = vunpack.c.h.b16 %v133
    %v208 = vunpack.c.l.b16 %v134
    %v209 = vunpack.c.h.b16 %v134
    %v210 = vunpack.c.l.b16 %v135
    %v211 = vunpack.c.h.b16 %v135
    %v212 = vunpack.c.l.b16 %v136
    %v213 = vunpack.c.h.b16 %v136
    %v214 = vunpack.c.l.b16 %v137
    %v215 = vunpack.c.h.b16 %v137
    %v216 = vunpack.c.l.b16 %v138
    %v217 = vunpack.c.h.b16 %v138
    %v218 = vunpack.c.l.b16 %v139
    %v219 = vunpack.c.h.b16 %v139
    %v220 = vunpack.c.l.b16 %v140
    %v221 = vunpack.c.h.b16 %v140
    %v222 = vunpack.c.l.b16 %v141
    %v223 = vunpack.c.h.b16 %v141
    %v224 = vunpack.c.l.b16 %v142
    %v225 = vunpack.c.h.b16 %v142
    %v226 = vunpack.c.l.b16 %v143
    %v227 = vunpack.c.h.b16 %v143
    %v228 = vunpack.c.l.b16 %v144
    %v229 = vunpack.c.h.b16 %v144
    %v230 = vunpack.c.l.b16 %v145
    %v231 = vunpack.c.h.b16 %v145
    %v232 = vunpack.c.l.b16 %v146
    %v233 = vunpack.c.h.b16 %v146
    %v234 = vunpack.c.l.b16 %v147
    %v235 = vunpack.c.h.b16 %v147
    %v236 = vunpack.c.l.b16 %v148
    %v237 = vunpack.c.h.b16 %v148
    %v238 = vunpack.c.l.b16 %v149
    %v239 = vunpack.c.h.b16 %v149
    %v240 = vunpack.c.l.b16 %v150
    %v241 = vunpack.c.h.b16 %v150
    %v242 = vunpack.c.l.b16 %v151
    %v243 = vunpack.c.h.b16 %v151
    %v244 = vunpack.c.l.b16 %v152
    %v245 = vunpack.c.h.b16 %v152
    %v246 = vunpack.c.l.b16 %v153
    %v247 = vunpack.c.h.b16 %v153
    %v248 = vunpack.c.l.b16 %v154
    %v249 = vunpack.c.h.b16 %v154
    %v250 = vunpack.c.l.b16 %v155
    %v251 = vunpack.c.h.b16 %v155
    %v252 = vpack.c.b16 %v192, %v188
    %v253 = vpack.c.b16 %v193, %v189
    %v254 = vpack.c.b16 %v194, %v190
    %v255 = vpack.c.b16 %v195, %v191
    %v256 = vpack.c.b16 %v200, %v196
    %v257 = vpack.c.b16 %v201, %v197
    %v258 = vpack.c.b16 %v202, %v198
    %v259 = vpack.c.b16 %v203, %v199
    %v260 = vpack.c.b16 %v208, %v204
    %v261 = vpack.c.b16 %v209, %v205
    %v262 = vpack.c.b16 %v210, %v206
    %v263 = vpack.c.b16 %v211, %v207
    %v264 = vpack.c.b16 %v216, %v212
    %v265 = vpack.c.b16 %v217, %v213
    %v266 = vpack.c.b16 %v218, %v214
    %v267 = vpack.c.b16 %v219, %v215
    %v268 = vpack.c.b16 %v224, %v220
    %v269 = vpack.c.b16 %v225, %v221
    %v270 = vpack.c.b16 %v226, %v222
    %v271 = vpack.c.b16 %v227, %v223
    %v272 = vpack.c.b16 %v232, %v228
    %v273 = vpack.c.b16 %v233, %v229
    %v274 = vpack.c.b16 %v234, %v230
    %v275 = vpack.c.b16 %v235, %v231
    %v276 = vpack.c.b16 %v240, %v236
    %v277 = vpack.c.b16 %v241, %v237
    %v278 = vpack.c.b16 %v242, %v238
    %v279 = vpack.c.b16 %v243, %v239
    %v280 = vpack.c.b16 %v248, %v244
    %v281 = vpack.c.b16 %v249, %v245
    %v282 = vpack.c.b16 %v250, %v246
    %v283 = vpack.c.b16 %v251, %v247
    %316 = vmatprep.subr.bf16.mxu0 %v253
    %317 = vmatpush1.bf16.msra.mxu0 %v252
    %318 = vmatprep.subr.bf16.mxu0 %v257
    %319 = vmatpush1.bf16.msra.mxu0 %v256
    %320 = vmatprep.subr.bf16.mxu0 %v261
    %321 = vmatpush1.bf16.msra.mxu0 %v260
    %322 = vmatprep.subr.bf16.mxu0 %v265
    %323 = vmatpush1.bf16.msra.mxu0 %v264
    %324 = vmatprep.subr.bf16.mxu0 %v269
    %325 = vmatpush1.bf16.msra.mxu0 %v268
    %326 = vmatprep.subr.bf16.mxu0 %v273
    %327 = vmatpush1.bf16.msra.mxu0 %v272
    %328 = vmatprep.subr.bf16.mxu0 %v277
    %329 = vmatpush1.bf16.msra.mxu0 %v276
    %330 = vmatprep.subr.bf16.mxu0 %v281
    %331 = vmatpush1.bf16.msra.mxu0 %v280
    %332 = vmatprep.subr.bf16.mxu0 0
    %333 = vmatpush1.bf16.msra.mxu0 0
    %334 = vmatprep.subr.bf16.mxu0 0
    %335 = vmatpush1.bf16.msra.mxu0 0
    %336 = vmatprep.subr.bf16.mxu0 0
    %337 = vmatpush1.bf16.msra.mxu0 0
    %338 = vmatprep.subr.bf16.mxu0 0
    %339 = vmatpush1.bf16.msra.mxu0 0
    %340 = vmatprep.subr.bf16.mxu0 0
    %341 = vmatpush1.bf16.msra.mxu0 0
    %342 = vmatprep.subr.bf16.mxu0 0
    %343 = vmatpush1.bf16.msra.mxu0 0
    %344 = vmatprep.subr.bf16.mxu0 0
    %345 = vmatpush1.bf16.msra.mxu0 0
    %346 = vmatprep.subr.bf16.mxu0 0
    %347 = vmatpush1.bf16.msra.mxu0 0
    %348 = vmatprep.mubr.bf16.mxu0 0
    %349 = vmatmul.mubr.bf16.gmra.mrb[0].mxu0 %v123
    %v350 = vpop.f32.mrb[0].mxu0
    %v351 = vadd.f32 0.0, %v350
    %v352 = vpop.f32.mrb[0].mxu0
    %v353 = vadd.f32 0.0, %v352
    %v354 = vpop.f32.mrb[0].mxu0
    %v355 = vpop.f32.mrb[0].mxu0
    %356 = vdwg.mxu0
    %357 = vmatprep.subr.bf16.mxu0 %v255
    %358 = vmatpush1.bf16.msra.mxu0 %v254
    %359 = vmatprep.subr.bf16.mxu0 %v259
    %360 = vmatpush1.bf16.msra.mxu0 %v258
    %361 = vmatprep.subr.bf16.mxu0 %v263
    %362 = vmatpush1.bf16.msra.mxu0 %v262
    %363 = vmatprep.subr.bf16.mxu0 %v267
    %364 = vmatpush1.bf16.msra.mxu0 %v266
    %365 = vmatprep.subr.bf16.mxu0 %v271
    %366 = vmatpush1.bf16.msra.mxu0 %v270
    %367 = vmatprep.subr.bf16.mxu0 %v275
    %368 = vmatpush1.bf16.msra.mxu0 %v274
    %369 = vmatprep.subr.bf16.mxu0 %v279
    %370 = vmatpush1.bf16.msra.mxu0 %v278
    %371 = vmatprep.subr.bf16.mxu0 %v283
    %372 = vmatpush1.bf16.msra.mxu0 %v282
    %373 = vmatprep.subr.bf16.mxu0 0
    %374 = vmatpush1.bf16.msra.mxu0 0
    %375 = vmatprep.subr.bf16.mxu0 0
    %376 = vmatpush1.bf16.msra.mxu0 0
    %377 = vmatprep.subr.bf16.mxu0 0
    %378 = vmatpush1.bf16.msra.mxu0 0
    %379 = vmatprep.subr.bf16.mxu0 0
    %380 = vmatpush1.bf16.msra.mxu0 0
    %381 = vmatprep.subr.bf16.mxu0 0
    %382 = vmatpush1.bf16.msra.mxu0 0
    %383 = vmatprep.subr.bf16.mxu0 0
    %384 = vmatpush1.bf16.msra.mxu0 0
    %385 = vmatprep.subr.bf16.mxu0 0
    %386 = vmatpush1.bf16.msra.mxu0 0
    %387 = vmatprep.subr.bf16.mxu0 0
    %388 = vmatpush1.bf16.msra.mxu0 0
    %389 = vmatprep.mubr.bf16.mxu0 0
    %390 = vmatmul.mubr.bf16.gmra.mrb[0].mxu0 %v123
    %v391 = vpop.f32.mrb[0].mxu0
    %v392 = vadd.f32 0.0, %v391
    %v393 = vpop.f32.mrb[0].mxu0
    %v394 = vadd.f32 0.0, %v393
    %v395 = vpop.f32.mrb[0].mxu0
    %v396 = vpop.f32.mrb[0].mxu0
    %397 = vdwg.mxu0
    %v430 = vunpack.c.l.b16 %v91
    %v431 = vunpack.c.h.b16 %v91
    %v432 = vunpack.c.l.b16 %v92
    %v433 = vunpack.c.h.b16 %v92
    %v434 = vunpack.c.l.b16 %v93
    %v435 = vunpack.c.h.b16 %v93
    %v436 = vunpack.c.l.b16 %v94
    %v437 = vunpack.c.h.b16 %v94
    %v438 = vunpack.c.l.b16 %v95
    %v439 = vunpack.c.h.b16 %v95
    %v440 = vunpack.c.l.b16 %v96
    %v441 = vunpack.c.h.b16 %v96
    %v442 = vunpack.c.l.b16 %v97
    %v443 = vunpack.c.h.b16 %v97
    %v444 = vunpack.c.l.b16 %v98
    %v445 = vunpack.c.h.b16 %v98
    %v446 = vunpack.c.l.b16 %v99
    %v447 = vunpack.c.h.b16 %v99
    %v448 = vunpack.c.l.b16 %v100
    %v449 = vunpack.c.h.b16 %v100
    %v450 = vunpack.c.l.b16 %v101
    %v451 = vunpack.c.h.b16 %v101
    %v452 = vunpack.c.l.b16 %v102
    %v453 = vunpack.c.h.b16 %v102
    %v454 = vunpack.c.l.b16 %v103
    %v455 = vunpack.c.h.b16 %v103
    %v456 = vunpack.c.l.b16 %v104
    %v457 = vunpack.c.h.b16 %v104
    %v458 = vunpack.c.l.b16 %v105
    %v459 = vunpack.c.h.b16 %v105
    %v460 = vunpack.c.l.b16 %v106
    %v461 = vunpack.c.h.b16 %v106
    %v462 = vunpack.c.l.b16 %v107
    %v463 = vunpack.c.h.b16 %v107
    %v464 = vunpack.c.l.b16 %v108
    %v465 = vunpack.c.h.b16 %v108
    %v466 = vunpack.c.l.b16 %v109
    %v467 = vunpack.c.h.b16 %v109
    %v468 = vunpack.c.l.b16 %v110
    %v469 = vunpack.c.h.b16 %v110
    %v470 = vunpack.c.l.b16 %v111
    %v471 = vunpack.c.h.b16 %v111
    %v472 = vunpack.c.l.b16 %v112
    %v473 = vunpack.c.h.b16 %v112
    %v474 = vunpack.c.l.b16 %v113
    %v475 = vunpack.c.h.b16 %v113
    %v476 = vunpack.c.l.b16 %v114
    %v477 = vunpack.c.h.b16 %v114
    %v478 = vunpack.c.l.b16 %v115
    %v479 = vunpack.c.h.b16 %v115
    %v480 = vunpack.c.l.b16 %v116
    %v481 = vunpack.c.h.b16 %v116
    %v482 = vunpack.c.l.b16 %v117
    %v483 = vunpack.c.h.b16 %v117
    %v484 = vunpack.c.l.b16 %v118
    %v485 = vunpack.c.h.b16 %v118
    %v486 = vunpack.c.l.b16 %v119
    %v487 = vunpack.c.h.b16 %v119
    %v488 = vunpack.c.l.b16 %v120
    %v489 = vunpack.c.h.b16 %v120
    %v490 = vunpack.c.l.b16 %v121
    %v491 = vunpack.c.h.b16 %v121
    %v492 = vunpack.c.l.b16 %v122
    %v493 = vunpack.c.h.b16 %v122
    %v494 = vpack.c.b16 %v434, %v430
    %v495 = vpack.c.b16 %v435, %v431
    %v496 = vpack.c.b16 %v436, %v432
    %v497 = vpack.c.b16 %v437, %v433
    %v498 = vpack.c.b16 %v442, %v438
    %v499 = vpack.c.b16 %v443, %v439
    %v500 = vpack.c.b16 %v444, %v440
    %v501 = vpack.c.b16 %v445, %v441
    %v502 = vpack.c.b16 %v450, %v446
    %v503 = vpack.c.b16 %v451, %v447
    %v504 = vpack.c.b16 %v452, %v448
    %v505 = vpack.c.b16 %v453, %v449
    %v506 = vpack.c.b16 %v458, %v454
    %v507 = vpack.c.b16 %v459, %v455
    %v508 = vpack.c.b16 %v460, %v456
    %v509 = vpack.c.b16 %v461, %v457
    %v510 = vpack.c.b16 %v466, %v462
    %v511 = vpack.c.b16 %v467, %v463
    %v512 = vpack.c.b16 %v468, %v464
    %v513 = vpack.c.b16 %v469, %v465
    %v514 = vpack.c.b16 %v474, %v470
    %v515 = vpack.c.b16 %v475, %v471
    %v516 = vpack.c.b16 %v476, %v472
    %v517 = vpack.c.b16 %v477, %v473
    %v518 = vpack.c.b16 %v482, %v478
    %v519 = vpack.c.b16 %v483, %v479
    %v520 = vpack.c.b16 %v484, %v480
    %v521 = vpack.c.b16 %v485, %v481
    %v522 = vpack.c.b16 %v490, %v486
    %v523 = vpack.c.b16 %v491, %v487
    %v524 = vpack.c.b16 %v492, %v488
    %v525 = vpack.c.b16 %v493, %v489
    %558 = vmatprep.subr.bf16.mxu0 %v495
    %559 = vmatpush1.bf16.msra.mxu0 %v494
    %560 = vmatprep.subr.bf16.mxu0 %v499
    %561 = vmatpush1.bf16.msra.mxu0 %v498
    %562 = vmatprep.subr.bf16.mxu0 %v503
    %563 = vmatpush1.bf16.msra.mxu0 %v502
    %564 = vmatprep.subr.bf16.mxu0 %v507
    %565 = vmatpush1.bf16.msra.mxu0 %v506
    %566 = vmatprep.subr.bf16.mxu0 %v511
    %567 = vmatpush1.bf16.msra.mxu0 %v510
    %568 = vmatprep.subr.bf16.mxu0 %v515
    %569 = vmatpush1.bf16.msra.mxu0 %v514
    %570 = vmatprep.subr.bf16.mxu0 %v519
    %571 = vmatpush1.bf16.msra.mxu0 %v518
    %572 = vmatprep.subr.bf16.mxu0 %v523
    %573 = vmatpush1.bf16.msra.mxu0 %v522
    %574 = vmatprep.subr.bf16.mxu0 0
    %575 = vmatpush1.bf16.msra.mxu0 0
    %576 = vmatprep.subr.bf16.mxu0 0
    %577 = vmatpush1.bf16.msra.mxu0 0
    %578 = vmatprep.subr.bf16.mxu0 0
    %579 = vmatpush1.bf16.msra.mxu0 0
    %580 = vmatprep.subr.bf16.mxu0 0
    %581 = vmatpush1.bf16.msra.mxu0 0
    %582 = vmatprep.subr.bf16.mxu0 0
    %583 = vmatpush1.bf16.msra.mxu0 0
    %584 = vmatprep.subr.bf16.mxu0 0
    %585 = vmatpush1.bf16.msra.mxu0 0
    %586 = vmatprep.subr.bf16.mxu0 0
    %587 = vmatpush1.bf16.msra.mxu0 0
    %588 = vmatprep.subr.bf16.mxu0 0
    %589 = vmatpush1.bf16.msra.mxu0 0
    %590 = vmatprep.mubr.bf16.mxu0 0
    %591 = vmatmul.mubr.bf16.gmra.mrb[0].mxu0 %v90
    %v592 = vpop.f32.mrb[0].mxu0
    %v593 = vadd.f32 %v351, %v592
    %v594 = vpop.f32.mrb[0].mxu0
    %v595 = vadd.f32 %v353, %v594
    %v596 = vpop.f32.mrb[0].mxu0
    %v597 = vpop.f32.mrb[0].mxu0
    %598 = vdwg.mxu0
    %599 = vmatprep.subr.bf16.mxu0 %v497
    %600 = vmatpush1.bf16.msra.mxu0 %v496
    %601 = vmatprep.subr.bf16.mxu0 %v501
    %602 = vmatpush1.bf16.msra.mxu0 %v500
    %603 = vmatprep.subr.bf16.mxu0 %v505
    %604 = vmatpush1.bf16.msra.mxu0 %v504
    %605 = vmatprep.subr.bf16.mxu0 %v509
    %606 = vmatpush1.bf16.msra.mxu0 %v508
    %607 = vmatprep.subr.bf16.mxu0 %v513
    %608 = vmatpush1.bf16.msra.mxu0 %v512
    %609 = vmatprep.subr.bf16.mxu0 %v517
    %610 = vmatpush1.bf16.msra.mxu0 %v516
    %611 = vmatprep.subr.bf16.mxu0 %v521
    %612 = vmatpush1.bf16.msra.mxu0 %v520
    %613 = vmatprep.subr.bf16.mxu0 %v525
    %614 = vmatpush1.bf16.msra.mxu0 %v524
    %615 = vmatprep.subr.bf16.mxu0 0
    %616 = vmatpush1.bf16.msra.mxu0 0
    %617 = vmatprep.subr.bf16.mxu0 0
    %618 = vmatpush1.bf16.msra.mxu0 0
    %619 = vmatprep.subr.bf16.mxu0 0
    %620 = vmatpush1.bf16.msra.mxu0 0
    %621 = vmatprep.subr.bf16.mxu0 0
    %622 = vmatpush1.bf16.msra.mxu0 0
    %623 = vmatprep.subr.bf16.mxu0 0
    %624 = vmatpush1.bf16.msra.mxu0 0
    %625 = vmatprep.subr.bf16.mxu0 0
    %626 = vmatpush1.bf16.msra.mxu0 0
    %627 = vmatprep.subr.bf16.mxu0 0
    %628 = vmatpush1.bf16.msra.mxu0 0
    %629 = vmatprep.subr.bf16.mxu0 0
    %630 = vmatpush1.bf16.msra.mxu0 0
    %631 = vmatprep.mubr.bf16.mxu0 0
    %632 = vmatmul.mubr.bf16.gmra.mrb[0].mxu0 %v90
    %v633 = vpop.f32.mrb[0].mxu0
    %v634 = vadd.f32 %v392, %v633
    %v635 = vpop.f32.mrb[0].mxu0
    %v636 = vadd.f32 %v394, %v635
    %v637 = vpop.f32.mrb[0].mxu0
    %v638 = vpop.f32.mrb[0].mxu0
    %639 = vdwg.mxu0
    %v640 = vld [vmem:[%s5] sm:$0xf]
    %v642 = vlaneseq
    %v643 = vshrl.u32 %v642, 7
    %v644 = vsub.s32 0, %v643
    %v645 = vrot.slane %v640, %v644
    %v646 = vlaneseq
    %v647 = vshrl.u32 %v646, 7
    %v648 = vsub.s32 1, %v647
    %v649 = vrot.slane %v640, %v648
    %v650 = vlaneseq
    %v651 = vshrl.u32 %v650, 7
    %v652 = vsub.s32 2, %v651
    %v653 = vrot.slane %v640, %v652
    %v654 = vlaneseq
    %v655 = vshrl.u32 %v654, 7
    %v656 = vsub.s32 3, %v655
    %v657 = vrot.slane %v640, %v656
    %v662 = vadd.f32 %v593, %v645
    %v663 = vadd.f32 %v595, %v649
    %v664 = vadd.f32 %v634, %v653
    %v665 = vadd.f32 %v636, %v657
    %v666 = vld [vmem:[#allocation7] sm:$0xff]
    %v667 = vxor.u32 %v662, 2147483648
    %v668 = vmul.f32 %v667, 1.442695
    %v669 = vpow.pop %v668
    %v670 = vadd.f32 %v669, 1.0
    %v671 = vrcp.pop %v670
    %v672 = vmul.f32 1.0, %v671
    %v673 = vxor.u32 %v663, 2147483648
    %v674 = vmul.f32 %v673, 1.442695
    %v675 = vpow.pop %v674
    %v676 = vadd.f32 %v675, 1.0
    %v677 = vrcp.pop %v676
    %v678 = vmul.f32 1.0, %v677
    %v679 = vtanh.pop %v664
    %v680 = vxor.u32 %v665, 2147483648
    %v681 = vmul.f32 %v680, 1.442695
    %v682 = vpow.pop %v681
    %v683 = vadd.f32 %v682, 1.0
    %v684 = vrcp.pop %v683
    %v685 = vmul.f32 1.0, %v684
    %v686 = vmul.f32 %v666, %v678
    %v687 = vmul.f32 %v672, %v679
    %v688 = vadd.f32 %v686, %v687
    %v689 = vtanh.pop %v688
    %v690 = vmul.f32 %v685, %v689
    %691 = vst [vmem:[#allocation11] sm:$0xff] %v690
    %692 = vst [vmem:[#allocation12] sm:$0xff] %v688
    // Predicated region
    $region46: #{tpu_custom_call.1} parent=1 // pred_check
      _
    $region47: #{tpu_custom_call.1} parent=1 // pred_check_branch
      %694 = sbr.rel (0) target = $region49
    $region48: #{tpu_custom_call.1} parent=1 // pred_region
      %s696 = ssub.s32 128, 128
      %697 = vsyncadd [#allocation4], %s696
      %s699 = sshll.u32 [#allocation11], 4
      %s700 = int_to_ptr.vmem [resolvable:$true] %s699
      %702 = dma.vmem_to_hbm [thread:$0]  %s700, 128, %s6, [#allocation4]
    $region49: #{tpu_custom_call.1} parent=1 // pred_fallthru
      _
    // Predicated region
    $region50: #{tpu_custom_call.1} parent=1 // pred_check
      _
    $region51: #{tpu_custom_call.1} parent=1 // pred_check_branch
      %704 = sbr.rel (0) target = $region53
    $region52: #{tpu_custom_call.1} parent=1 // pred_region
      %s706 = ssub.s32 128, 128
      %707 = vsyncadd [#allocation13], %s706
      %s709 = sshll.u32 [#allocation12], 4
      %s710 = int_to_ptr.vmem [resolvable:$true] %s709
      %712 = dma.vmem_to_hbm [thread:$0]  %s710, 128, %s7, [#allocation13]
    $region53: #{tpu_custom_call.1} parent=1 // pred_fallthru
      _
    // Predicated region
    $region54: #{tpu_custom_call.1} parent=1 // pred_check
      _
    $region55: #{tpu_custom_call.1} parent=1 // pred_check_branch
      %714 = sbr.rel (0) target = $region57
    $region56: #{tpu_custom_call.1} parent=1 // pred_region
      %715 = dma.done [#allocation4], 128
    $region57: #{tpu_custom_call.1} parent=1 // pred_fallthru
      _
    // Predicated region
    $region58: #{tpu_custom_call.1} parent=1 // pred_check
      _
    $region59: #{tpu_custom_call.1} parent=1 // pred_check_branch
      %717 = sbr.rel (0) target = $region61
    $region60: #{tpu_custom_call.1} parent=1 // pred_region
      %718 = dma.done [#allocation13], 128
    $region61: #{tpu_custom_call.1} parent=1 // pred_fallthru
      _
    %719 = vsyncpa [#allocation3], 1
    %720 = vsyncpa [#allocation6], 1
    %721 = vsyncpa [#allocation9], 1
    %722 = vsyncpa [#allocation4], 1
    %723 = vsyncpa [#allocation13], 1

</llo_original>
